<compile_context>
chip_gen: v7x
topology: tpu7x:2x2x1
jax: 0.10.0
libtpu: 0.0.40
codegen_flags: <defaults>
</compile_context>

<pallas_src>
import functools

import jax
import jax.numpy as jnp
from jax.experimental import pallas as pl
from jax.experimental.pallas import tpu as pltpu

_HIGHEST = jax.lax.Precision.HIGHEST


def _elu(x):
    # ELU(alpha=1): x if x > 0 else exp(x) - 1
    return jnp.where(x > 0, x, jnp.exp(jnp.minimum(x, 0.0)) - 1.0)


def _actor_critic_kernel(action_size,
                         x_ref, w1_ref, w2_ref, wh1_ref, wh2_ref,
                         bias_ref, inv_temp_ref, out_ref):
    hidden = w1_ref.shape[1]

    # Packed biases: [b1 | b2 | b_head1(actor|critic) | b_head2(padded)]
    b1 = bias_ref[:, 0:hidden]
    b2 = bias_ref[:, hidden:2 * hidden]
    bh1 = bias_ref[:, 2 * hidden:4 * hidden]
    bh2 = bias_ref[:, 4 * hidden:]

    x = x_ref[...]
    # --- main trunk ---
    h = _elu(jnp.dot(x, w1_ref[...],
                     preferred_element_type=jnp.float32,
                     precision=_HIGHEST) + b1)
    h = _elu(jnp.dot(h, w2_ref[...],
                     preferred_element_type=jnp.float32,
                     precision=_HIGHEST) + b2)

    # --- fused actor/critic heads, layer 1: (tb, 2*hidden) ---
    g = _elu(jnp.dot(h, wh1_ref[...],
                     preferred_element_type=jnp.float32,
                     precision=_HIGHEST) + bh1)

    # --- fused (block-diagonal) heads, layer 2: (tb, out_pad) ---
    # cols [0, A): actor logits, col A: critic value, cols > A: zero padding.
    y = jnp.dot(g, wh2_ref[...],
                preferred_element_type=jnp.float32,
                precision=_HIGHEST) + bh2

    inv_t = inv_temp_ref[0, 0]
    col = jax.lax.broadcasted_iota(jnp.int32, y.shape, dimension=1)
    is_logit = col < action_size

    # masked softmax over the action columns (per row); exact normalization
    logits = jnp.where(is_logit, y * inv_t, jnp.float32(-1e30))
    m = jnp.max(logits, axis=-1, keepdims=True)
    e = jnp.exp(logits - m)                      # masked cols -> 0
    denom = jnp.sum(e, axis=-1, keepdims=True)
    probs = e / denom

    value = jnp.where(col == action_size, y, 0.0)
    out_ref[...] = probs + value                 # single lane-dense store


def init_params(key, state_size, hidden_size, action_size):
    """PyTorch-Linear-style init. Weights stored (in, out); biases (1, out)."""
    def linear(k, fan_in, fan_out):
        kw, kb = jax.random.split(k)
        bound = 1.0 / jnp.sqrt(jnp.float32(fan_in))
        w = jax.random.uniform(kw, (fan_in, fan_out), jnp.float32, -bound, bound)
        b = jax.random.uniform(kb, (1, fan_out), jnp.float32, -bound, bound)
        return w, b

    keys = jax.random.split(key, 6)
    w1, b1 = linear(keys[0], state_size, hidden_size)      # main.0
    w2, b2 = linear(keys[1], hidden_size, hidden_size)     # main.2
    wa1, ba1 = linear(keys[2], hidden_size, hidden_size)   # actor_head.0
    wa2, ba2 = linear(keys[3], hidden_size, action_size)   # actor_head.2
    wc1, bc1 = linear(keys[4], hidden_size, hidden_size)   # critic_head.0
    wc2, bc2 = linear(keys[5], hidden_size, 1)              # critic_head.2
    return (w1, b1, w2, b2, wa1, ba1, wa2, ba2, wc1, bc1, wc2, bc2)


def pack_params(params, action_size):
    """One-time preprocessing: fuse head weights, pack biases, pad to lane width."""
    (w1, b1, w2, b2, wa1, ba1, wa2, ba2, wc1, bc1, wc2, bc2) = params
    out_pad = max(128, -(-(action_size + 1) // 128) * 128)   # lane-dense output width

    # fused head layer-1
    wh1 = jnp.concatenate([wa1, wc1], axis=1)                # (hidden, 2*hidden)
    bh1 = jnp.concatenate([ba1, bc1], axis=1)                # (1, 2*hidden)

    # fused block-diagonal head layer-2, zero-padded to out_pad lanes
    top = jnp.pad(wa2, ((0, 0), (0, out_pad - action_size)))                 # actor rows
    bot = jnp.pad(wc2, ((0, 0), (action_size, out_pad - action_size - 1)))   # critic rows
    wh2 = jnp.concatenate([top, bot], axis=0)                # (2*hidden, out_pad)
    bh2 = jnp.pad(jnp.concatenate([ba2, bc2], axis=1),
                  ((0, 0), (0, out_pad - action_size - 1)))  # (1, out_pad)

    bias_pack = jnp.concatenate([b1, b2, bh1, bh2], axis=1)  # (1, 4*hidden + out_pad)
    return (w1, w2, wh1, wh2, bias_pack, action_size, out_pad)


def actor_critic_forward(x, packed, temperature=1.0, block_b=8):
    """x: (B, state_size) or (state_size,). Returns (action_dist, value)."""
    w1, w2, wh1, wh2, bias_pack, action_size, out_pad = packed
    squeeze = x.ndim == 1
    if squeeze:
        x = x[None, :]
    B, state_size = x.shape
    hidden = w1.shape[1]

    pad_b = (-B) % block_b
    x_p = jnp.pad(x.astype(jnp.float32), ((0, pad_b), (0, 0)))
    Bp = B + pad_b

    inv_temp = jnp.full((1, 1), 1.0 / float(temperature), dtype=jnp.float32)
    bias_total = bias_pack.shape[1]

    flops = 2 * Bp * (state_size * hidden + hidden * hidden
                      + hidden * 2 * hidden + 2 * hidden * out_pad)
    cost = pl.CostEstimate(
        flops=flops,
        transcendentals=Bp * (4 * hidden + out_pad),
        bytes_accessed=4 * (x_p.size + w1.size + w2.size + wh1.size
                            + wh2.size + bias_pack.size + 1 + Bp * out_pad),
    )

    out = pl.pallas_call(
        functools.partial(_actor_critic_kernel, action_size),
        out_shape=jax.ShapeDtypeStruct((Bp, out_pad), jnp.float32),
        grid=(Bp // block_b,),
        in_specs=[
            pl.BlockSpec((block_b, state_size), lambda i: (i, 0)),      # x tile
            pl.BlockSpec((state_size, hidden), lambda i: (0, 0)),       # w1 (resident)
            pl.BlockSpec((hidden, hidden), lambda i: (0, 0)),           # w2 (resident)
            pl.BlockSpec((hidden, 2 * hidden), lambda i: (0, 0)),       # fused head L1
            pl.BlockSpec((2 * hidden, out_pad), lambda i: (0, 0)),      # fused head L2
            pl.BlockSpec((1, bias_total), lambda i: (0, 0)),            # packed biases
            pl.BlockSpec(memory_space=pltpu.MemorySpace.SMEM),          # 1/temperature
        ],
        out_specs=pl.BlockSpec((block_b, out_pad), lambda i: (i, 0)),
        compiler_params=pltpu.CompilerParams(
            dimension_semantics=("parallel",)),
        cost_estimate=cost,
    )(x_p, w1, w2, wh1, wh2, bias_pack, inv_temp)

    probs = out[:B, :action_size]
    value = out[:B, action_size:action_size + 1]
    if squeeze:
        return probs[0], value[0]
    return probs, value


def reference_forward(x, params, temperature=1.0):
    (w1, b1, w2, b2, wa1, ba1, wa2, ba2, wc1, bc1, wc2, bc2) = params
    if x.ndim == 1:
        x = x[None, :]

    def mm(a, b):
        return jnp.dot(a, b, precision=_HIGHEST)

    h = jax.nn.elu(mm(x, w1) + b1)
    h = jax.nn.elu(mm(h, w2) + b2)
    a = jax.nn.elu(mm(h, wa1) + ba1)
    probs = jax.nn.softmax((mm(a, wa2) + ba2) / temperature, axis=-1)
    c = jax.nn.elu(mm(h, wc1) + bc1)
    value = mm(c, wc2) + bc2
    return probs, value


if __name__ == "__main__":
    state_size, hidden_size, action_size = 16, 32, 4
    temperature = 1.5
    B = 16

    key = jax.random.PRNGKey(0)
    k_params, k_x = jax.random.split(key)
    params = init_params(k_params, state_size, hidden_size, action_size)
    packed = pack_params(params, action_size)
    x = jax.random.normal(k_x, (B, state_size), dtype=jnp.float32)

    probs, value = actor_critic_forward(x, packed, temperature)
    jax.block_until_ready((probs, value))

    ref_probs, ref_value = reference_forward(x, params, temperature)

    assert probs.shape == (B, action_size)
    assert value.shape == (B, 1)
    assert bool(jnp.all(jnp.abs(jnp.sum(probs, axis=-1) - 1.0) < 1e-3))
    assert bool(jnp.allclose(probs, ref_probs, atol=2e-3, rtol=2e-3))
    assert bool(jnp.allclose(value, ref_value, atol=2e-3, rtol=2e-3))

    # single 1-D state (same usage as the torch module); batch gets padded to 8
    p1, v1 = actor_critic_forward(x[0], packed, temperature)
    jax.block_until_ready((p1, v1))
    assert p1.shape == (action_size,) and v1.shape == (1,)

    print("KERNEL_OK")
</pallas_src>

<mosaic_0001>
module attributes {stable_mosaic.version = 11 : i64} {
  func.func @_actor_critic_kernel(%arg0: i32, %arg1: memref<8x16xf32, #tpu.memory_space<vmem>>, %arg2: memref<16x32xf32, #tpu.memory_space<vmem>>, %arg3: memref<32x32xf32, #tpu.memory_space<vmem>>, %arg4: memref<32x64xf32, #tpu.memory_space<vmem>>, %arg5: memref<64x128xf32, #tpu.memory_space<vmem>>, %arg6: memref<1x256xf32, #tpu.memory_space<vmem>>, %arg7: memref<1x1xf32, #tpu.memory_space<smem>>, %arg8: memref<8x128xf32, #tpu.memory_space<vmem>>) attributes {dimension_semantics = [#tpu.dimension_semantics<parallel>], iteration_bounds = array<i64: 2>, scalar_prefetch = 0 : i64, scratch_operands = 0 : i64, tpu.core_type = #tpu.core_type<tc>, window_params = [{transform_indices = @transform_0, window_bounds = array<i64: 8, 16>}, {pipeline_mode = #tpu.pipeline_mode<synchronous>, transform_indices = @transform_1, window_bounds = array<i64: 16, 32>}, {pipeline_mode = #tpu.pipeline_mode<synchronous>, transform_indices = @transform_2, window_bounds = array<i64: 32, 32>}, {pipeline_mode = #tpu.pipeline_mode<synchronous>, transform_indices = @transform_3, window_bounds = array<i64: 32, 64>}, {pipeline_mode = #tpu.pipeline_mode<synchronous>, transform_indices = @transform_4, window_bounds = array<i64: 64, 128>}, {pipeline_mode = #tpu.pipeline_mode<synchronous>, transform_indices = @transform_5, window_bounds = array<i64: 1, 256>}, {transform_indices = @transform_6, window_bounds = array<i64: 1, 1>}, {transform_indices = @transform_7, window_bounds = array<i64: 8, 128>}]} {
    %c0 = arith.constant 0 : index
    %c0_0 = arith.constant 0 : index
    %0 = vector.load %arg6[%c0, %c0_0] : memref<1x256xf32, #tpu.memory_space<vmem>>, vector<1x32xf32>
    %c0_1 = arith.constant 0 : index
    %c32 = arith.constant 32 : index
    %1 = vector.load %arg6[%c0_1, %c32] : memref<1x256xf32, #tpu.memory_space<vmem>>, vector<1x32xf32>
    %c0_2 = arith.constant 0 : index
    %c64 = arith.constant 64 : index
    %2 = vector.load %arg6[%c0_2, %c64] : memref<1x256xf32, #tpu.memory_space<vmem>>, vector<1x64xf32>
    %c0_3 = arith.constant 0 : index
    %c128 = arith.constant 128 : index
    %3 = vector.load %arg6[%c0_3, %c128] : memref<1x256xf32, #tpu.memory_space<vmem>>, vector<1x128xf32>
    %c0_4 = arith.constant 0 : index
    %c0_5 = arith.constant 0 : index
    %4 = vector.load %arg1[%c0_4, %c0_5] : memref<8x16xf32, #tpu.memory_space<vmem>>, vector<8x16xf32>
    %c0_6 = arith.constant 0 : index
    %c0_7 = arith.constant 0 : index
    %5 = vector.load %arg2[%c0_6, %c0_7] : memref<16x32xf32, #tpu.memory_space<vmem>>, vector<16x32xf32>
    %cst = arith.constant dense<0.000000e+00> : vector<8x32xf32>
    %6 = tpu.matmul %4, %5, %cst {dimension_numbers = #tpu.dot_dimension_numbers<[1], [0], [0], [1], [0, 0, 1, 1], [], []>, precision = #tpu.contract_precision<fp32>} : vector<8x16xf32>, vector<16x32xf32>, vector<8x32xf32> -> vector<8x32xf32>
    %7 = vector.broadcast %0 : vector<1x32xf32> to vector<8x32xf32>
    %8 = arith.addf %6, %7 : vector<8x32xf32>
    %cst_8 = arith.constant 0.000000e+00 : f32
    %9 = vector.broadcast %cst_8 : f32 to vector<8x32xf32>
    %10 = arith.cmpf ogt, %8, %9 : vector<8x32xf32>
    %cst_9 = arith.constant 0.000000e+00 : f32
    %11 = vector.broadcast %cst_9 : f32 to vector<8x32xf32>
    %12 = arith.minimumf %8, %11 : vector<8x32xf32>
    %13 = math.exp %12 : vector<8x32xf32>
    %cst_10 = arith.constant 1.000000e+00 : f32
    %14 = vector.broadcast %cst_10 : f32 to vector<8x32xf32>
    %15 = arith.subf %13, %14 : vector<8x32xf32>
    %16 = arith.select %10, %8, %15 : vector<8x32xi1>, vector<8x32xf32>
    %c0_11 = arith.constant 0 : index
    %c0_12 = arith.constant 0 : index
    %17 = vector.load %arg3[%c0_11, %c0_12] : memref<32x32xf32, #tpu.memory_space<vmem>>, vector<32x32xf32>
    %cst_13 = arith.constant dense<0.000000e+00> : vector<8x32xf32>
    %18 = tpu.matmul %16, %17, %cst_13 {dimension_numbers = #tpu.dot_dimension_numbers<[1], [0], [0], [1], [0, 0, 1, 1], [], []>, precision = #tpu.contract_precision<fp32>} : vector<8x32xf32>, vector<32x32xf32>, vector<8x32xf32> -> vector<8x32xf32>
    %19 = vector.broadcast %1 : vector<1x32xf32> to vector<8x32xf32>
    %20 = arith.addf %18, %19 : vector<8x32xf32>
    %cst_14 = arith.constant 0.000000e+00 : f32
    %21 = vector.broadcast %cst_14 : f32 to vector<8x32xf32>
    %22 = arith.cmpf ogt, %20, %21 : vector<8x32xf32>
    %cst_15 = arith.constant 0.000000e+00 : f32
    %23 = vector.broadcast %cst_15 : f32 to vector<8x32xf32>
    %24 = arith.minimumf %20, %23 : vector<8x32xf32>
    %25 = math.exp %24 : vector<8x32xf32>
    %cst_16 = arith.constant 1.000000e+00 : f32
    %26 = vector.broadcast %cst_16 : f32 to vector<8x32xf32>
    %27 = arith.subf %25, %26 : vector<8x32xf32>
    %28 = arith.select %22, %20, %27 : vector<8x32xi1>, vector<8x32xf32>
    %c0_17 = arith.constant 0 : index
    %c0_18 = arith.constant 0 : index
    %29 = vector.load %arg4[%c0_17, %c0_18] : memref<32x64xf32, #tpu.memory_space<vmem>>, vector<32x64xf32>
    %cst_19 = arith.constant dense<0.000000e+00> : vector<8x64xf32>
    %30 = tpu.matmul %28, %29, %cst_19 {dimension_numbers = #tpu.dot_dimension_numbers<[1], [0], [0], [1], [0, 0, 1, 1], [], []>, precision = #tpu.contract_precision<fp32>} : vector<8x32xf32>, vector<32x64xf32>, vector<8x64xf32> -> vector<8x64xf32>
    %31 = vector.broadcast %2 : vector<1x64xf32> to vector<8x64xf32>
    %32 = arith.addf %30, %31 : vector<8x64xf32>
    %cst_20 = arith.constant 0.000000e+00 : f32
    %33 = vector.broadcast %cst_20 : f32 to vector<8x64xf32>
    %34 = arith.cmpf ogt, %32, %33 : vector<8x64xf32>
    %cst_21 = arith.constant 0.000000e+00 : f32
    %35 = vector.broadcast %cst_21 : f32 to vector<8x64xf32>
    %36 = arith.minimumf %32, %35 : vector<8x64xf32>
    %37 = math.exp %36 : vector<8x64xf32>
    %cst_22 = arith.constant 1.000000e+00 : f32
    %38 = vector.broadcast %cst_22 : f32 to vector<8x64xf32>
    %39 = arith.subf %37, %38 : vector<8x64xf32>
    %40 = arith.select %34, %32, %39 : vector<8x64xi1>, vector<8x64xf32>
    %c0_23 = arith.constant 0 : index
    %c0_24 = arith.constant 0 : index
    %41 = vector.load %arg5[%c0_23, %c0_24] : memref<64x128xf32, #tpu.memory_space<vmem>>, vector<64x128xf32>
    %cst_25 = arith.constant dense<0.000000e+00> : vector<8x128xf32>
    %42 = tpu.matmul %40, %41, %cst_25 {dimension_numbers = #tpu.dot_dimension_numbers<[1], [0], [0], [1], [0, 0, 1, 1], [], []>, precision = #tpu.contract_precision<fp32>} : vector<8x64xf32>, vector<64x128xf32>, vector<8x128xf32> -> vector<8x128xf32>
    %43 = vector.broadcast %3 : vector<1x128xf32> to vector<8x128xf32>
    %44 = arith.addf %42, %43 : vector<8x128xf32>
    %c0_26 = arith.constant 0 : index
    %c0_27 = arith.constant 0 : index
    %45 = memref.load %arg7[%c0_26, %c0_27] : memref<1x1xf32, #tpu.memory_space<smem>>
    %46 = tpu.iota {dimensions = array<i32: 1>} : vector<8x128xi32>
    %c4_i32 = arith.constant 4 : i32
    %47 = vector.broadcast %c4_i32 : i32 to vector<8x128xi32>
    %48 = arith.cmpi slt, %46, %47 : vector<8x128xi32>
    %49 = vector.broadcast %45 : f32 to vector<8x128xf32>
    %50 = arith.mulf %44, %49 : vector<8x128xf32>
    %cst_28 = arith.constant -1.000000e+30 : f32
    %51 = vector.broadcast %cst_28 : f32 to vector<8x128xf32>
    %52 = arith.select %48, %50, %51 : vector<8x128xi1>, vector<8x128xf32>
    %cst_29 = arith.constant dense<0xFF800000> : vector<8xf32>
    %53 = vector.multi_reduction <maximumf>, %52, %cst_29 [1] : vector<8x128xf32> to vector<8xf32>
    %54 = vector.shape_cast %53 : vector<8xf32> to vector<8x1xf32>
    %55 = vector.broadcast %54 : vector<8x1xf32> to vector<8x128xf32>
    %56 = arith.subf %52, %55 : vector<8x128xf32>
    %57 = math.exp %56 : vector<8x128xf32>
    %cst_30 = arith.constant dense<0.000000e+00> : vector<8xf32>
    %58 = vector.multi_reduction <add>, %57, %cst_30 [1] : vector<8x128xf32> to vector<8xf32>
    %59 = vector.shape_cast %58 : vector<8xf32> to vector<8x1xf32>
    %60 = vector.broadcast %59 : vector<8x1xf32> to vector<8x128xf32>
    %61 = arith.divf %57, %60 : vector<8x128xf32>
    %c4_i32_31 = arith.constant 4 : i32
    %62 = vector.broadcast %c4_i32_31 : i32 to vector<8x128xi32>
    %63 = arith.cmpi eq, %46, %62 : vector<8x128xi32>
    %cst_32 = arith.constant 0.000000e+00 : f32
    %64 = vector.broadcast %cst_32 : f32 to vector<8x128xf32>
    %65 = arith.select %63, %44, %64 : vector<8x128xi1>, vector<8x128xf32>
    %66 = arith.addf %61, %65 : vector<8x128xf32>
    %c0_33 = arith.constant 0 : index
    %c0_34 = arith.constant 0 : index
    %67 = vector.load %arg8[%c0_33, %c0_34] : memref<8x128xf32, #tpu.memory_space<vmem>>, vector<8x128xf32>
    tpu.vector_store %arg8[%c0_33, %c0_34], %66 {strides = array<i32>} : memref<8x128xf32, #tpu.memory_space<vmem>>, vector<8x128xf32>,
    return
  }
  func.func @transform_0(%arg0: i32) -> (i32, i32) {
    %c0_i32 = arith.constant 0 : i32
    %c0_i32_0 = arith.constant 0 : i32
    return %arg0, %c0_i32 : i32, i32
  }
  func.func @transform_1(%arg0: i32) -> (i32, i32) {
    %c0_i32 = arith.constant 0 : i32
    %c0_i32_0 = arith.constant 0 : i32
    %c0_i32_1 = arith.constant 0 : i32
    return %c0_i32, %c0_i32_0 : i32, i32
  }
  func.func @transform_2(%arg0: i32) -> (i32, i32) {
    %c0_i32 = arith.constant 0 : i32
    %c0_i32_0 = arith.constant 0 : i32
    %c0_i32_1 = arith.constant 0 : i32
    return %c0_i32, %c0_i32_0 : i32, i32
  }
  func.func @transform_3(%arg0: i32) -> (i32, i32) {
    %c0_i32 = arith.constant 0 : i32
    %c0_i32_0 = arith.constant 0 : i32
    %c0_i32_1 = arith.constant 0 : i32
    return %c0_i32, %c0_i32_0 : i32, i32
  }
  func.func @transform_4(%arg0: i32) -> (i32, i32) {
    %c0_i32 = arith.constant 0 : i32
    %c0_i32_0 = arith.constant 0 : i32
    %c0_i32_1 = arith.constant 0 : i32
    return %c0_i32, %c0_i32_0 : i32, i32
  }
  func.func @transform_5(%arg0: i32) -> (i32, i32) {
    %c0_i32 = arith.constant 0 : i32
    %c0_i32_0 = arith.constant 0 : i32
    %c0_i32_1 = arith.constant 0 : i32
    return %c0_i32, %c0_i32_0 : i32, i32
  }
  func.func @transform_6(%arg0: i32) -> (i32, i32) {
    %c0_i32 = arith.constant 0 : i32
    %c0_i32_0 = arith.constant 0 : i32
    %c0_i32_1 = arith.constant 0 : i32
    return %c0_i32, %c0_i32_0 : i32, i32
  }
  func.func @transform_7(%arg0: i32) -> (i32, i32) {
    %c0_i32 = arith.constant 0 : i32
    %c0_i32_0 = arith.constant 0 : i32
    return %arg0, %c0_i32 : i32, i32
  }
}

</mosaic_0001>

<llo_original>
// kernel: tpu_custom_call.1
$region0: #{tpu_custom_call.1}
  #allocation0 [shape = 'u32[]', space=smem, size = 0x4, offset = 0x4, fixed_abs, tag = 'smem constant byte address 0x4 - core index']
  #allocation1 [shape = 'u32[144,128]{1,0:T(1,128)}', space=vmem, size = 0x12000, scoped, tag = 'internal scratch']
  #allocation2 [shape = 'f32[1,1]{1,0:T(1,128)S(6)}', space=smem, size = 0x200, scoped, tag = 'scoped memory for tpu_custom_call.1']
  %s0 = inlined_call_operand.hbm [shape: f32[16,16], index: 0, kind: input, shape index: {}]
  %s1 = inlined_call_operand.hbm [shape: f32[16,32], index: 1, kind: input, shape index: {}]
  %s2 = inlined_call_operand.hbm [shape: f32[32,32], index: 2, kind: input, shape index: {}]
  %s3 = inlined_call_operand.hbm [shape: f32[32,64], index: 3, kind: input, shape index: {}]
  %s4 = inlined_call_operand.hbm [shape: f32[64,128], index: 4, kind: input, shape index: {}]
  %s5 = inlined_call_operand.vmem [shape: f32[1,256], index: 5, kind: input, shape index: {}]
  %s6 = inlined_call_operand.<no memory space> [shape: f32[1,1], index: 6, kind: input, shape index: {}]
  %s7 = inlined_call_operand.hbm [shape: f32[16,128], index: 7, kind: output, shape index: {}]
  %s8 = sld [smem:[#allocation0]]
  $region81: #{tpu_custom_call.1} parent=0
    _
  %s10 = ssub.s32 1, %s8
  %s11 = scalar_select 0, %s10, %s8
  %12 = sst [smem:[#allocation2]] %s6
  $region1: #{tpu_custom_call.1} parent=0
    #allocation3 [shape = 'u8[8192]{0}', space=vmem, size = 0x2000, scoped, tag = 'input window, operand 0']
    #allocation4 [shape = 's32[2]{0}', space=sflag, size = 0x8, scoped, tag = 'scoped memory for tpu_custom_call.1']
    #allocation5 [shape = 's32[2]{0}', space=sflag, size = 0x8, scoped, tag = 'scoped memory for tpu_custom_call.1']
    #allocation6 [shape = 'u8[8192]{0}', space=vmem, size = 0x2000, scoped, tag = 'input window, operand 1, single buffered']
    #allocation7 [shape = 's32[1]{0}', space=sflag, size = 0x4, scoped, tag = 'scoped memory for tpu_custom_call.1']
    #allocation8 [shape = 'u8[16384]{0}', space=vmem, size = 0x4000, scoped, tag = 'input window, operand 2, single buffered']
    #allocation9 [shape = 'u8[16384]{0}', space=vmem, size = 0x4000, scoped, tag = 'input window, operand 3, single buffered']
    #allocation10 [shape = 's32[1]{0}', space=sflag, size = 0x4, scoped, tag = 'scoped memory for tpu_custom_call.1']
    #allocation11 [shape = 'u8[32768]{0}', space=vmem, size = 0x8000, scoped, tag = 'input window, operand 4, single buffered']
    #allocation12 [shape = 'u8[8192]{0}', space=vmem, size = 0x2000, scoped, tag = 'output window, operand 0']
    %13 = vsyncpa [#allocation4], 0
    %s14 = scalar_lea.sflag [#allocation4], 1
    %15 = vsyncpa %s14, 0
    %16 = vsyncpa [#allocation7], 0
    %17 = vsyncpa [#allocation10], 0
    %18 = vsyncpa [#allocation5], 0
    %s19 = scalar_lea.sflag [#allocation5], 1
    %20 = vsyncpa %s19, 0
    loop: start=0, step=1, limit=4
    $region2: #{tpu_custom_call.1} parent=1 // loop_pre_header
      _
    $region3: #{tpu_custom_call.1} parent=1 // loop_header
      %s22 = sphi 0, %s26
      %p23 = scmp.ge.s32.totalorder %s22, 4
      %s32 = sphi 0, %s34
      %s35 = sphi 0, %s32
      %s36 = sphi 0, %s35
      %s52 = sphi 0, %s36
      %s56 = sphi 0, %s56
      %s58 = sphi 0, %s56
      %s59 = sphi 0, %s58
      %s73 = sphi 0, %s59
      %s77 = sphi 0, %s77
      %s79 = sphi 0, %s77
      %s80 = sphi 0, %s79
      %s94 = sphi 0, %s80
      %s98 = sphi 0, %s98
      %s100 = sphi 0, %s98
      %s101 = sphi 0, %s100
      %s115 = sphi 0, %s101
      %s119 = sphi 0, %s119
      %s121 = sphi 0, %s119
      %s122 = sphi 0, %s121
      %s136 = sphi 0, %s122
      %s140 = sphi 0, %s140
      %s142 = sphi 0, %s140
      %s143 = sphi 0, %s142
      %s157 = sphi 0, %s143
      %s161 = sphi 0, %s161
      %s163 = sphi 0, %s161
      %s164 = sphi 0, %s163
      %s178 = sphi 0, %s164
      %s184 = sphi 0, %s186
      %s187 = sphi 0, %s184
      %s188 = sphi 0, %s187
      %s204 = sphi 0, %s188
    $region4: #{tpu_custom_call.1} parent=1 // loop_header_branch
      %25 = sbr.rel (%p23) target = $region8
    $region5: #{tpu_custom_call.1} parent=1 // loop_body
      %s27 = ssub.s32 %s22, 1
      %s28 = ssub.s32 %s22, 2
      %s29 = sadd.s32 %s22, 1
      %s30 = ssub.s32 %s22, %s29
      %p31 = scmp.eq.s32.totalorder %s30, 0
      %s33 = sadd.s32 %s32, 1
      %s34 = scalar_select %p31, %s32, %s33
      %p37 = pneg %p31
      %p38 = scmp.eq.s32.totalorder %s22, 1
      %p39 = por %p37, %p38
      %p40 = scmp.ne.s32.totalorder %s32, %s35
      %p41 = scmp.eq.s32.totalorder %s22, 0
      %p42 = por %p40, %p41
      %p43 = scmp.ne.s32.totalorder %s32, %s35
      %p44 = scmp.eq.s32.totalorder %s27, 1
      %p45 = por %p43, %p44
      %p46 = scmp.ne.s32.totalorder %s35, %s36
      %p47 = scmp.eq.s32.totalorder %s27, 0
      %p48 = por %p46, %p47
      %p49 = scmp.ne.s32.totalorder %s35, %s36
      %p50 = scmp.eq.s32.totalorder %s28, 1
      %p51 = por %p49, %p50
      %p53 = scmp.ne.s32.totalorder %s36, %s52
      %p54 = scmp.eq.s32.totalorder %s28, 0
      %p55 = por %p53, %p54
      %s57 = sadd.s32 %s56, 1
      %p60 = scmp.eq.s32.totalorder %s22, 1
      %p61 = scmp.ne.s32.totalorder %s56, %s58
      %p62 = scmp.eq.s32.totalorder %s22, 0
      %p63 = por %p61, %p62
      %p64 = scmp.ne.s32.totalorder %s56, %s58
      %p65 = scmp.eq.s32.totalorder %s27, 1
      %p66 = por %p64, %p65
      %p67 = scmp.ne.s32.totalorder %s58, %s59
      %p68 = scmp.eq.s32.totalorder %s27, 0
      %p69 = por %p67, %p68
      %p70 = scmp.ne.s32.totalorder %s58, %s59
      %p71 = scmp.eq.s32.totalorder %s28, 1
      %p72 = por %p70, %p71
      %p74 = scmp.ne.s32.totalorder %s59, %s73
      %p75 = scmp.eq.s32.totalorder %s28, 0
      %p76 = por %p74, %p75
      %s78 = sadd.s32 %s77, 1
      %p81 = scmp.eq.s32.totalorder %s22, 1
      %p82 = scmp.ne.s32.totalorder %s77, %s79
      %p83 = scmp.eq.s32.totalorder %s22, 0
      %p84 = por %p82, %p83
      %p85 = scmp.ne.s32.totalorder %s77, %s79
      %p86 = scmp.eq.s32.totalorder %s27, 1
      %p87 = por %p85, %p86
      %p88 = scmp.ne.s32.totalorder %s79, %s80
      %p89 = scmp.eq.s32.totalorder %s27, 0
      %p90 = por %p88, %p89
      %p91 = scmp.ne.s32.totalorder %s79, %s80
      %p92 = scmp.eq.s32.totalorder %s28, 1
      %p93 = por %p91, %p92
      %p95 = scmp.ne.s32.totalorder %s80, %s94
      %p96 = scmp.eq.s32.totalorder %s28, 0
      %p97 = por %p95, %p96
      %s99 = sadd.s32 %s98, 1
      %p102 = scmp.eq.s32.totalorder %s22, 1
      %p103 = scmp.ne.s32.totalorder %s98, %s100
      %p104 = scmp.eq.s32.totalorder %s22, 0
      %p105 = por %p103, %p104
      %p106 = scmp.ne.s32.totalorder %s98, %s100
      %p107 = scmp.eq.s32.totalorder %s27, 1
      %p108 = por %p106, %p107
      %p109 = scmp.ne.s32.totalorder %s100, %s101
      %p110 = scmp.eq.s32.totalorder %s27, 0
      %p111 = por %p109, %p110
      %p112 = scmp.ne.s32.totalorder %s100, %s101
      %p113 = scmp.eq.s32.totalorder %s28, 1
      %p114 = por %p112, %p113
      %p116 = scmp.ne.s32.totalorder %s101, %s115
      %p117 = scmp.eq.s32.totalorder %s28, 0
      %p118 = por %p116, %p117
      %s120 = sadd.s32 %s119, 1
      %p123 = scmp.eq.s32.totalorder %s22, 1
      %p124 = scmp.ne.s32.totalorder %s119, %s121
      %p125 = scmp.eq.s32.totalorder %s22, 0
      %p126 = por %p124, %p125
      %p127 = scmp.ne.s32.totalorder %s119, %s121
      %p128 = scmp.eq.s32.totalorder %s27, 1
      %p129 = por %p127, %p128
      %p130 = scmp.ne.s32.totalorder %s121, %s122
      %p131 = scmp.eq.s32.totalorder %s27, 0
      %p132 = por %p130, %p131
      %p133 = scmp.ne.s32.totalorder %s121, %s122
      %p134 = scmp.eq.s32.totalorder %s28, 1
      %p135 = por %p133, %p134
      %p137 = scmp.ne.s32.totalorder %s122, %s136
      %p138 = scmp.eq.s32.totalorder %s28, 0
      %p139 = por %p137, %p138
      %s141 = sadd.s32 %s140, 1
      %p144 = scmp.eq.s32.totalorder %s22, 1
      %p145 = scmp.ne.s32.totalorder %s140, %s142
      %p146 = scmp.eq.s32.totalorder %s22, 0
      %p147 = por %p145, %p146
      %p148 = scmp.ne.s32.totalorder %s140, %s142
      %p149 = scmp.eq.s32.totalorder %s27, 1
      %p150 = por %p148, %p149
      %p151 = scmp.ne.s32.totalorder %s142, %s143
      %p152 = scmp.eq.s32.totalorder %s27, 0
      %p153 = por %p151, %p152
      %p154 = scmp.ne.s32.totalorder %s142, %s143
      %p155 = scmp.eq.s32.totalorder %s28, 1
      %p156 = por %p154, %p155
      %p158 = scmp.ne.s32.totalorder %s143, %s157
      %p159 = scmp.eq.s32.totalorder %s28, 0
      %p160 = por %p158, %p159
      %s162 = sadd.s32 %s161, 1
      %p165 = scmp.eq.s32.totalorder %s22, 1
      %p166 = scmp.ne.s32.totalorder %s161, %s163
      %p167 = scmp.eq.s32.totalorder %s22, 0
      %p168 = por %p166, %p167
      %p169 = scmp.ne.s32.totalorder %s161, %s163
      %p170 = scmp.eq.s32.totalorder %s27, 1
      %p171 = por %p169, %p170
      %p172 = scmp.ne.s32.totalorder %s163, %s164
      %p173 = scmp.eq.s32.totalorder %s27, 0
      %p174 = por %p172, %p173
      %p175 = scmp.ne.s32.totalorder %s163, %s164
      %p176 = scmp.eq.s32.totalorder %s28, 1
      %p177 = por %p175, %p176
      %p179 = scmp.ne.s32.totalorder %s164, %s178
      %p180 = scmp.eq.s32.totalorder %s28, 0
      %p181 = por %p179, %p180
      %s182 = ssub.s32 %s22, %s29
      %p183 = scmp.eq.s32.totalorder %s182, 0
      %s185 = sadd.s32 %s184, 1
      %s186 = scalar_select %p183, %s184, %s185
      %p189 = pneg %p183
      %p190 = scmp.eq.s32.totalorder %s22, 1
      %p191 = por %p189, %p190
      %p192 = scmp.ne.s32.totalorder %s184, %s187
      %p193 = scmp.eq.s32.totalorder %s22, 0
      %p194 = por %p192, %p193
      %p195 = scmp.ne.s32.totalorder %s184, %s187
      %p196 = scmp.eq.s32.totalorder %s27, 1
      %p197 = por %p195, %p196
      %p198 = scmp.ne.s32.totalorder %s187, %s188
      %p199 = scmp.eq.s32.totalorder %s27, 0
      %p200 = por %p198, %p199
      %p201 = scmp.ne.s32.totalorder %s187, %s188
      %p202 = scmp.eq.s32.totalorder %s28, 1
      %p203 = por %p201, %p202
      %p205 = scmp.ne.s32.totalorder %s188, %s204
      %p206 = scmp.eq.s32.totalorder %s28, 0
      %p207 = por %p205, %p206
      %p208 = scmp.le.s32.totalorder 1, %s22
      %p209 = scmp.lt.s32.totalorder %s22, 3
      %p210 = pnand %p208, %p209
      %p211 = pneg %p210
      // Predicated region
      $region9: #{tpu_custom_call.1} parent=5 // pred_check
        _
      $region10: #{tpu_custom_call.1} parent=5 // pred_check_branch
        %213 = sbr.rel (%p210) target = $region12
      $region11: #{tpu_custom_call.1} parent=5 // pred_region
        %s214 = ssub.s32 %s22, 1
        // Predicated region
        $region13: #{tpu_custom_call.1} parent=11 // pred_check
          %p215 = pneg %p69
        $region14: #{tpu_custom_call.1} parent=11 // pred_check_branch
          %217 = sbr.rel (%p215) target = $region16
        $region15: #{tpu_custom_call.1} parent=11 // pred_region
          %s219 = ssub.s32 256, 256
          %220 = vsyncadd [#allocation7], %s219
          %s221 = sshll.u32 [#allocation6], 4
          %s222 = int_to_ptr.vmem [resolvable:$true] %s221
          %227 = dma.hbm_to_vmem [thread:$0]  %s1, 256, %s222, [#allocation7], 128, 128, 8
        $region16: #{tpu_custom_call.1} parent=11 // pred_fallthru
          _
        // Predicated region
        $region17: #{tpu_custom_call.1} parent=11 // pred_check
          %p228 = pneg %p90
        $region18: #{tpu_custom_call.1} parent=11 // pred_check_branch
          %230 = sbr.rel (%p228) target = $region20
        $region19: #{tpu_custom_call.1} parent=11 // pred_region
          %s232 = ssub.s32 512, 512
          %233 = vsyncadd [#allocation7], %s232
          %s234 = sshll.u32 [#allocation8], 4
          %s235 = int_to_ptr.vmem [resolvable:$true] %s234
          %240 = dma.hbm_to_vmem [thread:$0]  %s2, 512, %s235, [#allocation7], 128, 128, 8
        $region20: #{tpu_custom_call.1} parent=11 // pred_fallthru
          _
        // Predicated region
        $region21: #{tpu_custom_call.1} parent=11 // pred_check
          %p241 = pneg %p111
        $region22: #{tpu_custom_call.1} parent=11 // pred_check_branch
          %243 = sbr.rel (%p241) target = $region24
        $region23: #{tpu_custom_call.1} parent=11 // pred_region
          %s245 = ssub.s32 512, 512
          %246 = vsyncadd [#allocation10], %s245
          %s247 = sshll.u32 [#allocation9], 4
          %s248 = int_to_ptr.vmem [resolvable:$true] %s247
          %253 = dma.hbm_to_vmem [thread:$0]  %s3, 512, %s248, [#allocation10], 128, 128, 8
        $region24: #{tpu_custom_call.1} parent=11 // pred_fallthru
          _
        // Predicated region
        $region25: #{tpu_custom_call.1} parent=11 // pred_check
          %p254 = pneg %p132
        $region26: #{tpu_custom_call.1} parent=11 // pred_check_branch
          %256 = sbr.rel (%p254) target = $region28
        $region27: #{tpu_custom_call.1} parent=11 // pred_region
          %s258 = ssub.s32 1024, 1024
          %259 = vsyncadd [#allocation10], %s258
          %s260 = sshll.u32 [#allocation11], 4
          %s261 = int_to_ptr.vmem [resolvable:$true] %s260
          %266 = dma.hbm_to_vmem [thread:$0]  %s4, 1024, %s261, [#allocation10], 128, 128, 8
        $region28: #{tpu_custom_call.1} parent=11 // pred_fallthru
          _
        // Predicated region
        $region29: #{tpu_custom_call.1} parent=11 // pred_check
          %p267 = pneg %p153
        $region30: #{tpu_custom_call.1} parent=11 // pred_check_branch
          %269 = sbr.rel (%p267) target = $region32
        $region31: #{tpu_custom_call.1} parent=11 // pred_region
          _
        $region32: #{tpu_custom_call.1} parent=11 // pred_fallthru
          _
        // Predicated region
        $region33: #{tpu_custom_call.1} parent=11 // pred_check
          %p270 = pneg %p174
        $region34: #{tpu_custom_call.1} parent=11 // pred_check_branch
          %272 = sbr.rel (%p270) target = $region36
        $region35: #{tpu_custom_call.1} parent=11 // pred_region
          _
        $region36: #{tpu_custom_call.1} parent=11 // pred_fallthru
          _
      $region12: #{tpu_custom_call.1} parent=5 // pred_fallthru
        _
      %p273 = scmp.lt.s32.totalorder %s22, 2
      // Predicated region
      $region37: #{tpu_custom_call.1} parent=5 // pred_check
        %p274 = pneg %p273
      $region38: #{tpu_custom_call.1} parent=5 // pred_check_branch
        %276 = sbr.rel (%p274) target = $region40
      $region39: #{tpu_custom_call.1} parent=5 // pred_region
        // Predicated region
        $region41: #{tpu_custom_call.1} parent=39 // pred_check
          %p277 = pneg %p42
        $region42: #{tpu_custom_call.1} parent=39 // pred_check_branch
          %279 = sbr.rel (%p277) target = $region44
        $region43: #{tpu_custom_call.1} parent=39 // pred_region
          %s280 = sand.u32 %s32, 1
          %s281 = scalar_lea.sflag [#allocation4], %s280
          %s282 = sand.u32 %s32, 1
          %s283 = smul.addr %s282, 8
          %s284 = scalar_lea.vmem [#allocation3], %s283
          %s286 = ssub.s32 128, 128
          %287 = vsyncadd %s281, %s286
          %s288 = smul.addr %s22, 128
          %s289 = scalar_lea.hbm %s0, %s288
          %s291 = sshll.u32 %s284, 4
          %s292 = int_to_ptr.vmem [resolvable:$true] %s291
          %294 = dma.hbm_to_vmem [thread:$0]  %s289, 128, %s292, %s281
        $region44: #{tpu_custom_call.1} parent=39 // pred_fallthru
          _
      $region40: #{tpu_custom_call.1} parent=5 // pred_fallthru
        _
      %p295 = scmp.le.s32.totalorder 1, %s22
      %p296 = scmp.lt.s32.totalorder %s22, 3
      %p297 = pnand %p295, %p296
      %p298 = pneg %p297
      // Predicated region
      $region45: #{tpu_custom_call.1} parent=5 // pred_check
        _
      $region46: #{tpu_custom_call.1} parent=5 // pred_check_branch
        %300 = sbr.rel (%p297) target = $region48
      $region47: #{tpu_custom_call.1} parent=5 // pred_region
        %s301 = ssub.s32 %s22, 1
        %s302 = sand.u32 %s35, 1
        %s303 = scalar_lea.sflag [#allocation4], %s302
        %s304 = sand.u32 %s35, 1
        %s305 = smul.addr %s304, 8
        %s306 = scalar_lea.vmem [#allocation3], %s305
        // Predicated region
        $region49: #{tpu_custom_call.1} parent=47 // pred_check
          %p307 = pneg %p48
        $region50: #{tpu_custom_call.1} parent=47 // pred_check_branch
          %309 = sbr.rel (%p307) target = $region52
        $region51: #{tpu_custom_call.1} parent=47 // pred_region
          %310 = dma.done %s303, 128
        $region52: #{tpu_custom_call.1} parent=47 // pred_fallthru
          _
        // Predicated region
        $region53: #{tpu_custom_call.1} parent=47 // pred_check
          %p311 = pneg %p69
        $region54: #{tpu_custom_call.1} parent=47 // pred_check_branch
          %313 = sbr.rel (%p311) target = $region56
        $region55: #{tpu_custom_call.1} parent=47 // pred_region
          %314 = dma.done [#allocation7], 256
        $region56: #{tpu_custom_call.1} parent=47 // pred_fallthru
          _
        // Predicated region
        $region57: #{tpu_custom_call.1} parent=47 // pred_check
          %p315 = pneg %p90
        $region58: #{tpu_custom_call.1} parent=47 // pred_check_branch
          %317 = sbr.rel (%p315) target = $region60
        $region59: #{tpu_custom_call.1} parent=47 // pred_region
          %318 = dma.done [#allocation7], 512
        $region60: #{tpu_custom_call.1} parent=47 // pred_fallthru
          _
        // Predicated region
        $region61: #{tpu_custom_call.1} parent=47 // pred_check
          %p319 = pneg %p111
        $region62: #{tpu_custom_call.1} parent=47 // pred_check_branch
          %321 = sbr.rel (%p319) target = $region64
        $region63: #{tpu_custom_call.1} parent=47 // pred_region
          %322 = dma.done [#allocation10], 512
        $region64: #{tpu_custom_call.1} parent=47 // pred_fallthru
          _
        // Predicated region
        $region65: #{tpu_custom_call.1} parent=47 // pred_check
          %p323 = pneg %p132
        $region66: #{tpu_custom_call.1} parent=47 // pred_check_branch
          %325 = sbr.rel (%p323) target = $region68
        $region67: #{tpu_custom_call.1} parent=47 // pred_region
          %326 = dma.done [#allocation10], 1024
        $region68: #{tpu_custom_call.1} parent=47 // pred_fallthru
          _
        %s327 = sand.u32 %s35, 1
        %s328 = scalar_lea.sflag [#allocation4], %s327
        %s329 = sand.u32 %s35, 1
        %s330 = smul.addr %s329, 8
        %s331 = scalar_lea.vmem [#allocation3], %s330
        %p332 = pneg %p48
        %p333 = pneg %p45
        %p334 = pneg %p69
        %p335 = pneg %p66
        %p336 = pneg %p90
        %p337 = pneg %p87
        %p338 = pneg %p111
        %p339 = pneg %p108
        %p340 = pneg %p132
        %p341 = pneg %p129
        %p342 = pneg %p153
        %p343 = pneg %p150
        %p344 = pneg %p174
        %p345 = pneg %p171
        %p346 = pneg %p200
        %p347 = pneg %p197
        %s348 = sand.u32 %s187, 1
        %s349 = scalar_lea.sflag [#allocation5], %s348
        %s350 = sand.u32 %s187, 1
        %s351 = smul.addr %s350, 8
        %s352 = scalar_lea.vmem [#allocation12], %s351
        %v353 = vld [vmem:[%s5] sm:$0x1]
        %v354 = vld [vmem:[%s5 + $0x1] sm:$0x1]
        %v355 = vld [vmem:[%s306] sm:$0xff]
        %v356 = vld [vmem:[#allocation6] sm:$0xff]
        %v357 = vld [vmem:[#allocation6 + $0x8] sm:$0xff]
        %v359 = vlaneseq
        %v360 = vshrl.u32 %v359, 7
        %v361 = vsub.s32 0, %v360
        %v362 = vrot.slane %v353, %v361
        %vm364 = vcmask 130048
        %v366 = vsel %vm364, %v355, 0
        %368 = vmatprep.subr.mxu0 0.0
        %v369 = vand.u32 %v356, 4294901760
        %370 = vmatpush1.msra.mxu0 %v369
        %371 = vmatprep.subr.mxu0 0.0
        %v372 = vand.u32 %v357, 4294901760
        %373 = vmatpush1.msra.mxu0 %v372
        %374 = vmatprep.subr.mxu0 0.0
        %375 = vmatpush1.msra.mxu0 0.0
        %376 = vmatprep.subr.mxu0 0.0
        %377 = vmatpush1.msra.mxu0 0.0
        %378 = vmatprep.subr.mxu0 0.0
        %379 = vmatpush1.msra.mxu0 0.0
        %380 = vmatprep.subr.mxu0 0.0
        %381 = vmatpush1.msra.mxu0 0.0
        %382 = vmatprep.subr.mxu0 0.0
        %383 = vmatpush1.msra.mxu0 0.0
        %384 = vmatprep.subr.mxu0 0.0
        %385 = vmatpush1.msra.mxu0 0.0
        %386 = vmatprep.subr.mxu0 0.0
        %387 = vmatpush1.msra.mxu0 0.0
        %388 = vmatprep.subr.mxu0 0.0
        %389 = vmatpush1.msra.mxu0 0.0
        %390 = vmatprep.subr.mxu0 0.0
        %391 = vmatpush1.msra.mxu0 0.0
        %392 = vmatprep.subr.mxu0 0.0
        %393 = vmatpush1.msra.mxu0 0.0
        %394 = vmatprep.subr.mxu0 0.0
        %395 = vmatpush1.msra.mxu0 0.0
        %396 = vmatprep.subr.mxu0 0.0
        %397 = vmatpush1.msra.mxu0 0.0
        %398 = vmatprep.subr.mxu0 0.0
        %399 = vmatpush1.msra.mxu0 0.0
        %400 = vmatprep.subr.mxu0 0.0
        %401 = vmatpush1.msra.mxu0 0.0
        %402 = vmatprep.subr.mxu0 0.0
        %403 = vmatpush1.msra.mxu0 0.0
        %404 = vmatprep.subr.mxu0 0.0
        %405 = vmatpush1.msra.mxu0 0.0
        %406 = vmatprep.subr.mxu0 0.0
        %407 = vmatpush1.msra.mxu0 0.0
        %408 = vmatprep.subr.mxu0 0.0
        %409 = vmatpush1.msra.mxu0 0.0
        %410 = vmatprep.subr.mxu0 0.0
        %411 = vmatpush1.msra.mxu0 0.0
        %412 = vmatprep.subr.mxu0 0.0
        %413 = vmatpush1.msra.mxu0 0.0
        %414 = vmatprep.subr.mxu0 0.0
        %415 = vmatpush1.msra.mxu0 0.0
        %416 = vmatprep.subr.mxu0 0.0
        %417 = vmatpush1.msra.mxu0 0.0
        %418 = vmatprep.subr.mxu0 0.0
        %419 = vmatpush1.msra.mxu0 0.0
        %420 = vmatprep.subr.mxu0 0.0
        %421 = vmatpush1.msra.mxu0 0.0
        %422 = vmatprep.subr.mxu0 0.0
        %423 = vmatpush1.msra.mxu0 0.0
        %424 = vmatprep.subr.mxu0 0.0
        %425 = vmatpush1.msra.mxu0 0.0
        %426 = vmatprep.subr.mxu0 0.0
        %427 = vmatpush1.msra.mxu0 0.0
        %428 = vmatprep.subr.mxu0 0.0
        %429 = vmatpush1.msra.mxu0 0.0
        %430 = vmatprep.subr.mxu0 0.0
        %431 = vmatpush1.msra.mxu0 0.0
        %432 = vmatprep.subr.mxu0 0.0
        %433 = vmatpush1.msra.mxu0 0.0
        %434 = vmatprep.mubr.f32.mxu0 0.0
        %v435 = vand.u32 %v366, 4294901760
        %v436 = vsub.f32 %v366, %v435
        %v437 = vand.u32 %v436, 4294901760
        %v438 = vsub.f32 %v436, %v437
        %v439 = vand.u32 %v438, 4294901760
        %440 = vmatmul.mubr.f32.gmra.mrb[0].mxu0 %v439
        %v441 = vpop.f32.mrb[0].mxu0
        %v442 = vadd.f32 %v362, %v441
        %v443 = vpop.f32.mrb[0].mxu0
        %444 = vdwg.mxu0
        %445 = vmatprep.subr.mxu0 0.0
        %v446 = vand.u32 %v356, 4294901760
        %v447 = vsub.f32 %v356, %v446
        %v448 = vand.u32 %v447, 4294901760
        %v449 = vsub.f32 %v447, %v448
        %v450 = vand.u32 %v449, 4294901760
        %451 = vmatpush1.msra.mxu0 %v450
        %452 = vmatprep.subr.mxu0 0.0
        %v453 = vand.u32 %v357, 4294901760
        %v454 = vsub.f32 %v357, %v453
        %v455 = vand.u32 %v454, 4294901760
        %v456 = vsub.f32 %v454, %v455
        %v457 = vand.u32 %v456, 4294901760
        %458 = vmatpush1.msra.mxu0 %v457
        %459 = vmatprep.subr.mxu0 0.0
        %460 = vmatpush1.msra.mxu0 0.0
        %461 = vmatprep.subr.mxu0 0.0
        %462 = vmatpush1.msra.mxu0 0.0
        %463 = vmatprep.subr.mxu0 0.0
        %464 = vmatpush1.msra.mxu0 0.0
        %465 = vmatprep.subr.mxu0 0.0
        %466 = vmatpush1.msra.mxu0 0.0
        %467 = vmatprep.subr.mxu0 0.0
        %468 = vmatpush1.msra.mxu0 0.0
        %469 = vmatprep.subr.mxu0 0.0
        %470 = vmatpush1.msra.mxu0 0.0
        %471 = vmatprep.subr.mxu0 0.0
        %472 = vmatpush1.msra.mxu0 0.0
        %473 = vmatprep.subr.mxu0 0.0
        %474 = vmatpush1.msra.mxu0 0.0
        %475 = vmatprep.subr.mxu0 0.0
        %476 = vmatpush1.msra.mxu0 0.0
        %477 = vmatprep.subr.mxu0 0.0
        %478 = vmatpush1.msra.mxu0 0.0
        %479 = vmatprep.subr.mxu0 0.0
        %480 = vmatpush1.msra.mxu0 0.0
        %481 = vmatprep.subr.mxu0 0.0
        %482 = vmatpush1.msra.mxu0 0.0
        %483 = vmatprep.subr.mxu0 0.0
        %484 = vmatpush1.msra.mxu0 0.0
        %485 = vmatprep.subr.mxu0 0.0
        %486 = vmatpush1.msra.mxu0 0.0
        %487 = vmatprep.subr.mxu0 0.0
        %488 = vmatpush1.msra.mxu0 0.0
        %489 = vmatprep.subr.mxu0 0.0
        %490 = vmatpush1.msra.mxu0 0.0
        %491 = vmatprep.subr.mxu0 0.0
        %492 = vmatpush1.msra.mxu0 0.0
        %493 = vmatprep.subr.mxu0 0.0
        %494 = vmatpush1.msra.mxu0 0.0
        %495 = vmatprep.subr.mxu0 0.0
        %496 = vmatpush1.msra.mxu0 0.0
        %497 = vmatprep.subr.mxu0 0.0
        %498 = vmatpush1.msra.mxu0 0.0
        %499 = vmatprep.subr.mxu0 0.0
        %500 = vmatpush1.msra.mxu0 0.0
        %501 = vmatprep.subr.mxu0 0.0
        %502 = vmatpush1.msra.mxu0 0.0
        %503 = vmatprep.subr.mxu0 0.0
        %504 = vmatpush1.msra.mxu0 0.0
        %505 = vmatprep.subr.mxu0 0.0
        %506 = vmatpush1.msra.mxu0 0.0
        %507 = vmatprep.subr.mxu0 0.0
        %508 = vmatpush1.msra.mxu0 0.0
        %509 = vmatprep.subr.mxu0 0.0
        %510 = vmatpush1.msra.mxu0 0.0
        %511 = vmatprep.subr.mxu0 0.0
        %512 = vmatpush1.msra.mxu0 0.0
        %513 = vmatprep.subr.mxu0 0.0
        %514 = vmatpush1.msra.mxu0 0.0
        %515 = vmatprep.subr.mxu0 0.0
        %516 = vmatpush1.msra.mxu0 0.0
        %517 = vmatprep.subr.mxu0 0.0
        %518 = vmatpush1.msra.mxu0 0.0
        %519 = vmatprep.mubr.f32.mxu0 0.0
        %v520 = vand.u32 %v366, 4294901760
        %521 = vmatmul.mubr.f32.gmra.mrb[0].mxu0 %v520
        %v522 = vpop.f32.mrb[0].mxu0
        %v523 = vadd.f32 %v442, %v522
        %v524 = vpop.f32.mrb[0].mxu0
        %525 = vdwg.mxu0
        %526 = vmatprep.subr.mxu0 0.0
        %v527 = vand.u32 %v356, 4294901760
        %v528 = vsub.f32 %v356, %v527
        %529 = vmatpush1.msra.mxu0 %v528
        %530 = vmatprep.subr.mxu0 0.0
        %v531 = vand.u32 %v357, 4294901760
        %v532 = vsub.f32 %v357, %v531
        %533 = vmatpush1.msra.mxu0 %v532
        %534 = vmatprep.subr.mxu0 0.0
        %535 = vmatpush1.msra.mxu0 0.0
        %536 = vmatprep.subr.mxu0 0.0
        %537 = vmatpush1.msra.mxu0 0.0
        %538 = vmatprep.subr.mxu0 0.0
        %539 = vmatpush1.msra.mxu0 0.0
        %540 = vmatprep.subr.mxu0 0.0
        %541 = vmatpush1.msra.mxu0 0.0
        %542 = vmatprep.subr.mxu0 0.0
        %543 = vmatpush1.msra.mxu0 0.0
        %544 = vmatprep.subr.mxu0 0.0
        %545 = vmatpush1.msra.mxu0 0.0
        %546 = vmatprep.subr.mxu0 0.0
        %547 = vmatpush1.msra.mxu0 0.0
        %548 = vmatprep.subr.mxu0 0.0
        %549 = vmatpush1.msra.mxu0 0.0
        %550 = vmatprep.subr.mxu0 0.0
        %551 = vmatpush1.msra.mxu0 0.0
        %552 = vmatprep.subr.mxu0 0.0
        %553 = vmatpush1.msra.mxu0 0.0
        %554 = vmatprep.subr.mxu0 0.0
        %555 = vmatpush1.msra.mxu0 0.0
        %556 = vmatprep.subr.mxu0 0.0
        %557 = vmatpush1.msra.mxu0 0.0
        %558 = vmatprep.subr.mxu0 0.0
        %559 = vmatpush1.msra.mxu0 0.0
        %560 = vmatprep.subr.mxu0 0.0
        %561 = vmatpush1.msra.mxu0 0.0
        %562 = vmatprep.subr.mxu0 0.0
        %563 = vmatpush1.msra.mxu0 0.0
        %564 = vmatprep.subr.mxu0 0.0
        %565 = vmatpush1.msra.mxu0 0.0
        %566 = vmatprep.subr.mxu0 0.0
        %567 = vmatpush1.msra.mxu0 0.0
        %568 = vmatprep.subr.mxu0 0.0
        %569 = vmatpush1.msra.mxu0 0.0
        %570 = vmatprep.subr.mxu0 0.0
        %571 = vmatpush1.msra.mxu0 0.0
        %572 = vmatprep.subr.mxu0 0.0
        %573 = vmatpush1.msra.mxu0 0.0
        %574 = vmatprep.subr.mxu0 0.0
        %575 = vmatpush1.msra.mxu0 0.0
        %576 = vmatprep.subr.mxu0 0.0
        %577 = vmatpush1.msra.mxu0 0.0
        %578 = vmatprep.subr.mxu0 0.0
        %579 = vmatpush1.msra.mxu0 0.0
        %580 = vmatprep.subr.mxu0 0.0
        %581 = vmatpush1.msra.mxu0 0.0
        %582 = vmatprep.subr.mxu0 0.0
        %583 = vmatpush1.msra.mxu0 0.0
        %584 = vmatprep.subr.mxu0 0.0
        %585 = vmatpush1.msra.mxu0 0.0
        %586 = vmatprep.subr.mxu0 0.0
        %587 = vmatpush1.msra.mxu0 0.0
        %588 = vmatprep.subr.mxu0 0.0
        %589 = vmatpush1.msra.mxu0 0.0
        %590 = vmatprep.subr.mxu0 0.0
        %591 = vmatpush1.msra.mxu0 0.0
        %592 = vmatprep.subr.mxu0 0.0
        %593 = vmatpush1.msra.mxu0 0.0
        %594 = vmatprep.mubr.f32.mxu0 0.0
        %v595 = vand.u32 %v366, 4294901760
        %v596 = vsub.f32 %v366, %v595
        %597 = vmatmul.mubr.f32.gmra.mrb[0].mxu0 %v596
        %v598 = vpop.f32.mrb[0].mxu0
        %v599 = vadd.f32 %v523, %v598
        %v600 = vpop.f32.mrb[0].mxu0
        %601 = vdwg.mxu0
        %602 = vmatprep.subr.mxu0 0.0
        %v603 = vand.u32 %v356, 4294901760
        %604 = vmatpush1.msra.mxu0 %v603
        %605 = vmatprep.subr.mxu0 0.0
        %v606 = vand.u32 %v357, 4294901760
        %607 = vmatpush1.msra.mxu0 %v606
        %608 = vmatprep.subr.mxu0 0.0
        %609 = vmatpush1.msra.mxu0 0.0
        %610 = vmatprep.subr.mxu0 0.0
        %611 = vmatpush1.msra.mxu0 0.0
        %612 = vmatprep.subr.mxu0 0.0
        %613 = vmatpush1.msra.mxu0 0.0
        %614 = vmatprep.subr.mxu0 0.0
        %615 = vmatpush1.msra.mxu0 0.0
        %616 = vmatprep.subr.mxu0 0.0
        %617 = vmatpush1.msra.mxu0 0.0
        %618 = vmatprep.subr.mxu0 0.0
        %619 = vmatpush1.msra.mxu0 0.0
        %620 = vmatprep.subr.mxu0 0.0
        %621 = vmatpush1.msra.mxu0 0.0
        %622 = vmatprep.subr.mxu0 0.0
        %623 = vmatpush1.msra.mxu0 0.0
        %624 = vmatprep.subr.mxu0 0.0
        %625 = vmatpush1.msra.mxu0 0.0
        %626 = vmatprep.subr.mxu0 0.0
        %627 = vmatpush1.msra.mxu0 0.0
        %628 = vmatprep.subr.mxu0 0.0
        %629 = vmatpush1.msra.mxu0 0.0
        %630 = vmatprep.subr.mxu0 0.0
        %631 = vmatpush1.msra.mxu0 0.0
        %632 = vmatprep.subr.mxu0 0.0
        %633 = vmatpush1.msra.mxu0 0.0
        %634 = vmatprep.subr.mxu0 0.0
        %635 = vmatpush1.msra.mxu0 0.0
        %636 = vmatprep.subr.mxu0 0.0
        %637 = vmatpush1.msra.mxu0 0.0
        %638 = vmatprep.subr.mxu0 0.0
        %639 = vmatpush1.msra.mxu0 0.0
        %640 = vmatprep.subr.mxu0 0.0
        %641 = vmatpush1.msra.mxu0 0.0
        %642 = vmatprep.subr.mxu0 0.0
        %643 = vmatpush1.msra.mxu0 0.0
        %644 = vmatprep.subr.mxu0 0.0
        %645 = vmatpush1.msra.mxu0 0.0
        %646 = vmatprep.subr.mxu0 0.0
        %647 = vmatpush1.msra.mxu0 0.0
        %648 = vmatprep.subr.mxu0 0.0
        %649 = vmatpush1.msra.mxu0 0.0
        %650 = vmatprep.subr.mxu0 0.0
        %651 = vmatpush1.msra.mxu0 0.0
        %652 = vmatprep.subr.mxu0 0.0
        %653 = vmatpush1.msra.mxu0 0.0
        %654 = vmatprep.subr.mxu0 0.0
        %655 = vmatpush1.msra.mxu0 0.0
        %656 = vmatprep.subr.mxu0 0.0
        %657 = vmatpush1.msra.mxu0 0.0
        %658 = vmatprep.subr.mxu0 0.0
        %659 = vmatpush1.msra.mxu0 0.0
        %660 = vmatprep.subr.mxu0 0.0
        %661 = vmatpush1.msra.mxu0 0.0
        %662 = vmatprep.subr.mxu0 0.0
        %663 = vmatpush1.msra.mxu0 0.0
        %664 = vmatprep.subr.mxu0 0.0
        %665 = vmatpush1.msra.mxu0 0.0
        %666 = vmatprep.subr.mxu0 0.0
        %667 = vmatpush1.msra.mxu0 0.0
        %668 = vmatprep.mubr.f32.mxu0 0.0
        %v669 = vand.u32 %v366, 4294901760
        %v670 = vsub.f32 %v366, %v669
        %v671 = vand.u32 %v670, 4294901760
        %672 = vmatmul.mubr.f32.gmra.mrb[0].mxu0 %v671
        %v673 = vpop.f32.mrb[0].mxu0
        %v674 = vadd.f32 %v599, %v673
        %v675 = vpop.f32.mrb[0].mxu0
        %676 = vdwg.mxu0
        %677 = vmatprep.subr.mxu0 0.0
        %v678 = vand.u32 %v356, 4294901760
        %v679 = vsub.f32 %v356, %v678
        %v680 = vand.u32 %v679, 4294901760
        %681 = vmatpush1.msra.mxu0 %v680
        %682 = vmatprep.subr.mxu0 0.0
        %v683 = vand.u32 %v357, 4294901760
        %v684 = vsub.f32 %v357, %v683
        %v685 = vand.u32 %v684, 4294901760
        %686 = vmatpush1.msra.mxu0 %v685
        %687 = vmatprep.subr.mxu0 0.0
        %688 = vmatpush1.msra.mxu0 0.0
        %689 = vmatprep.subr.mxu0 0.0
        %690 = vmatpush1.msra.mxu0 0.0
        %691 = vmatprep.subr.mxu0 0.0
        %692 = vmatpush1.msra.mxu0 0.0
        %693 = vmatprep.subr.mxu0 0.0
        %694 = vmatpush1.msra.mxu0 0.0
        %695 = vmatprep.subr.mxu0 0.0
        %696 = vmatpush1.msra.mxu0 0.0
        %697 = vmatprep.subr.mxu0 0.0
        %698 = vmatpush1.msra.mxu0 0.0
        %699 = vmatprep.subr.mxu0 0.0
        %700 = vmatpush1.msra.mxu0 0.0
        %701 = vmatprep.subr.mxu0 0.0
        %702 = vmatpush1.msra.mxu0 0.0
        %703 = vmatprep.subr.mxu0 0.0
        %704 = vmatpush1.msra.mxu0 0.0
        %705 = vmatprep.subr.mxu0 0.0
        %706 = vmatpush1.msra.mxu0 0.0
        %707 = vmatprep.subr.mxu0 0.0
        %708 = vmatpush1.msra.mxu0 0.0
        %709 = vmatprep.subr.mxu0 0.0
        %710 = vmatpush1.msra.mxu0 0.0
        %711 = vmatprep.subr.mxu0 0.0
        %712 = vmatpush1.msra.mxu0 0.0
        %713 = vmatprep.subr.mxu0 0.0
        %714 = vmatpush1.msra.mxu0 0.0
        %715 = vmatprep.subr.mxu0 0.0
        %716 = vmatpush1.msra.mxu0 0.0
        %717 = vmatprep.subr.mxu0 0.0
        %718 = vmatpush1.msra.mxu0 0.0
        %719 = vmatprep.subr.mxu0 0.0
        %720 = vmatpush1.msra.mxu0 0.0
        %721 = vmatprep.subr.mxu0 0.0
        %722 = vmatpush1.msra.mxu0 0.0
        %723 = vmatprep.subr.mxu0 0.0
        %724 = vmatpush1.msra.mxu0 0.0
        %725 = vmatprep.subr.mxu0 0.0
        %726 = vmatpush1.msra.mxu0 0.0
        %727 = vmatprep.subr.mxu0 0.0
        %728 = vmatpush1.msra.mxu0 0.0
        %729 = vmatprep.subr.mxu0 0.0
        %730 = vmatpush1.msra.mxu0 0.0
        %731 = vmatprep.subr.mxu0 0.0
        %732 = vmatpush1.msra.mxu0 0.0
        %733 = vmatprep.subr.mxu0 0.0
        %734 = vmatpush1.msra.mxu0 0.0
        %735 = vmatprep.subr.mxu0 0.0
        %736 = vmatpush1.msra.mxu0 0.0
        %737 = vmatprep.subr.mxu0 0.0
        %738 = vmatpush1.msra.mxu0 0.0
        %739 = vmatprep.subr.mxu0 0.0
        %740 = vmatpush1.msra.mxu0 0.0
        %741 = vmatprep.subr.mxu0 0.0
        %742 = vmatpush1.msra.mxu0 0.0
        %743 = vmatprep.subr.mxu0 0.0
        %744 = vmatpush1.msra.mxu0 0.0
        %745 = vmatprep.subr.mxu0 0.0
        %746 = vmatpush1.msra.mxu0 0.0
        %747 = vmatprep.mubr.f32.mxu0 0.0
        %v748 = vand.u32 %v366, 4294901760
        %749 = vmatmul.mubr.f32.gmra.mrb[0].mxu0 %v748
        %v750 = vpop.f32.mrb[0].mxu0
        %v751 = vadd.f32 %v674, %v750
        %v752 = vpop.f32.mrb[0].mxu0
        %753 = vdwg.mxu0
        %754 = vmatprep.subr.mxu0 0.0
        %v755 = vand.u32 %v356, 4294901760
        %756 = vmatpush1.msra.mxu0 %v755
        %757 = vmatprep.subr.mxu0 0.0
        %v758 = vand.u32 %v357, 4294901760
        %759 = vmatpush1.msra.mxu0 %v758
        %760 = vmatprep.subr.mxu0 0.0
        %761 = vmatpush1.msra.mxu0 0.0
        %762 = vmatprep.subr.mxu0 0.0
        %763 = vmatpush1.msra.mxu0 0.0
        %764 = vmatprep.subr.mxu0 0.0
        %765 = vmatpush1.msra.mxu0 0.0
        %766 = vmatprep.subr.mxu0 0.0
        %767 = vmatpush1.msra.mxu0 0.0
        %768 = vmatprep.subr.mxu0 0.0
        %769 = vmatpush1.msra.mxu0 0.0
        %770 = vmatprep.subr.mxu0 0.0
        %771 = vmatpush1.msra.mxu0 0.0
        %772 = vmatprep.subr.mxu0 0.0
        %773 = vmatpush1.msra.mxu0 0.0
        %774 = vmatprep.subr.mxu0 0.0
        %775 = vmatpush1.msra.mxu0 0.0
        %776 = vmatprep.subr.mxu0 0.0
        %777 = vmatpush1.msra.mxu0 0.0
        %778 = vmatprep.subr.mxu0 0.0
        %779 = vmatpush1.msra.mxu0 0.0
        %780 = vmatprep.subr.mxu0 0.0
        %781 = vmatpush1.msra.mxu0 0.0
        %782 = vmatprep.subr.mxu0 0.0
        %783 = vmatpush1.msra.mxu0 0.0
        %784 = vmatprep.subr.mxu0 0.0
        %785 = vmatpush1.msra.mxu0 0.0
        %786 = vmatprep.subr.mxu0 0.0
        %787 = vmatpush1.msra.mxu0 0.0
        %788 = vmatprep.subr.mxu0 0.0
        %789 = vmatpush1.msra.mxu0 0.0
        %790 = vmatprep.subr.mxu0 0.0
        %791 = vmatpush1.msra.mxu0 0.0
        %792 = vmatprep.subr.mxu0 0.0
        %793 = vmatpush1.msra.mxu0 0.0
        %794 = vmatprep.subr.mxu0 0.0
        %795 = vmatpush1.msra.mxu0 0.0
        %796 = vmatprep.subr.mxu0 0.0
        %797 = vmatpush1.msra.mxu0 0.0
        %798 = vmatprep.subr.mxu0 0.0
        %799 = vmatpush1.msra.mxu0 0.0
        %800 = vmatprep.subr.mxu0 0.0
        %801 = vmatpush1.msra.mxu0 0.0
        %802 = vmatprep.subr.mxu0 0.0
        %803 = vmatpush1.msra.mxu0 0.0
        %804 = vmatprep.subr.mxu0 0.0
        %805 = vmatpush1.msra.mxu0 0.0
        %806 = vmatprep.subr.mxu0 0.0
        %807 = vmatpush1.msra.mxu0 0.0
        %808 = vmatprep.subr.mxu0 0.0
        %809 = vmatpush1.msra.mxu0 0.0
        %810 = vmatprep.subr.mxu0 0.0
        %811 = vmatpush1.msra.mxu0 0.0
        %812 = vmatprep.subr.mxu0 0.0
        %813 = vmatpush1.msra.mxu0 0.0
        %814 = vmatprep.subr.mxu0 0.0
        %815 = vmatpush1.msra.mxu0 0.0
        %816 = vmatprep.subr.mxu0 0.0
        %817 = vmatpush1.msra.mxu0 0.0
        %818 = vmatprep.subr.mxu0 0.0
        %819 = vmatpush1.msra.mxu0 0.0
        %820 = vmatprep.mubr.f32.mxu0 0.0
        %v821 = vand.u32 %v366, 4294901760
        %822 = vmatmul.mubr.f32.gmra.mrb[0].mxu0 %v821
        %v823 = vpop.f32.mrb[0].mxu0
        %v824 = vadd.f32 %v751, %v823
        %v825 = vpop.f32.mrb[0].mxu0
        %826 = vdwg.mxu0
        %vm827 = vcmp.gt.f32.partialorder %v824, 0.0
        %v828 = vmin.f32 %v824, 0.0
        %v829 = vmul.f32 %v828, 1.442695
        %v830 = vpow.pop %v829
        %v831 = vsub.f32 %v830, 1.0
        %v832 = vsel %vm827, %v824, %v831
        %v833 = vld [vmem:[#allocation8] sm:$0xff]
        %v834 = vld [vmem:[#allocation8 + $0x8] sm:$0xff]
        %v835 = vld [vmem:[#allocation8 + $0x10] sm:$0xff]
        %v836 = vld [vmem:[#allocation8 + $0x18] sm:$0xff]
        %837 = vrot.lane.b32.xlu0 %v362, 96
        %v838 = vpop.permute.xlu0 %837
        %vm840 = vcmask 261120
        %v842 = vsel %vm840, %v832, 0
        %844 = vmatprep.subr.mxu0 0.0
        %v845 = vand.u32 %v833, 4294901760
        %846 = vmatpush1.msra.mxu0 %v845
        %847 = vmatprep.subr.mxu0 0.0
        %v848 = vand.u32 %v834, 4294901760
        %849 = vmatpush1.msra.mxu0 %v848
        %850 = vmatprep.subr.mxu0 0.0
        %v851 = vand.u32 %v835, 4294901760
        %852 = vmatpush1.msra.mxu0 %v851
        %853 = vmatprep.subr.mxu0 0.0
        %v854 = vand.u32 %v836, 4294901760
        %855 = vmatpush1.msra.mxu0 %v854
        %856 = vmatprep.subr.mxu0 0.0
        %857 = vmatpush1.msra.mxu0 0.0
        %858 = vmatprep.subr.mxu0 0.0
        %859 = vmatpush1.msra.mxu0 0.0
        %860 = vmatprep.subr.mxu0 0.0
        %861 = vmatpush1.msra.mxu0 0.0
        %862 = vmatprep.subr.mxu0 0.0
        %863 = vmatpush1.msra.mxu0 0.0
        %864 = vmatprep.subr.mxu0 0.0
        %865 = vmatpush1.msra.mxu0 0.0
        %866 = vmatprep.subr.mxu0 0.0
        %867 = vmatpush1.msra.mxu0 0.0
        %868 = vmatprep.subr.mxu0 0.0
        %869 = vmatpush1.msra.mxu0 0.0
        %870 = vmatprep.subr.mxu0 0.0
        %871 = vmatpush1.msra.mxu0 0.0
        %872 = vmatprep.subr.mxu0 0.0
        %873 = vmatpush1.msra.mxu0 0.0
        %874 = vmatprep.subr.mxu0 0.0
        %875 = vmatpush1.msra.mxu0 0.0
        %876 = vmatprep.subr.mxu0 0.0
        %877 = vmatpush1.msra.mxu0 0.0
        %878 = vmatprep.subr.mxu0 0.0
        %879 = vmatpush1.msra.mxu0 0.0
        %880 = vmatprep.subr.mxu0 0.0
        %881 = vmatpush1.msra.mxu0 0.0
        %882 = vmatprep.subr.mxu0 0.0
        %883 = vmatpush1.msra.mxu0 0.0
        %884 = vmatprep.subr.mxu0 0.0
        %885 = vmatpush1.msra.mxu0 0.0
        %886 = vmatprep.subr.mxu0 0.0
        %887 = vmatpush1.msra.mxu0 0.0
        %888 = vmatprep.subr.mxu0 0.0
        %889 = vmatpush1.msra.mxu0 0.0
        %890 = vmatprep.subr.mxu0 0.0
        %891 = vmatpush1.msra.mxu0 0.0
        %892 = vmatprep.subr.mxu0 0.0
        %893 = vmatpush1.msra.mxu0 0.0
        %894 = vmatprep.subr.mxu0 0.0
        %895 = vmatpush1.msra.mxu0 0.0
        %896 = vmatprep.subr.mxu0 0.0
        %897 = vmatpush1.msra.mxu0 0.0
        %898 = vmatprep.subr.mxu0 0.0
        %899 = vmatpush1.msra.mxu0 0.0
        %900 = vmatprep.subr.mxu0 0.0
        %901 = vmatpush1.msra.mxu0 0.0
        %902 = vmatprep.subr.mxu0 0.0
        %903 = vmatpush1.msra.mxu0 0.0
        %904 = vmatprep.subr.mxu0 0.0
        %905 = vmatpush1.msra.mxu0 0.0
        %906 = vmatprep.subr.mxu0 0.0
        %907 = vmatpush1.msra.mxu0 0.0
        %908 = vmatprep.subr.mxu0 0.0
        %909 = vmatpush1.msra.mxu0 0.0
        %910 = vmatprep.subr.mxu0 0.0
        %911 = vmatpush1.msra.mxu0 0.0
        %912 = vmatprep.mubr.f32.mxu0 0.0
        %v913 = vand.u32 %v842, 4294901760
        %v914 = vsub.f32 %v842, %v913
        %v915 = vand.u32 %v914, 4294901760
        %v916 = vsub.f32 %v914, %v915
        %v917 = vand.u32 %v916, 4294901760
        %918 = vmatmul.mubr.f32.gmra.mrb[0].mxu0 %v917
        %v919 = vpop.f32.mrb[0].mxu0
        %v920 = vadd.f32 %v838, %v919
        %v921 = vpop.f32.mrb[0].mxu0
        %922 = vdwg.mxu0
        %923 = vmatprep.subr.mxu0 0.0
        %v924 = vand.u32 %v833, 4294901760
        %v925 = vsub.f32 %v833, %v924
        %v926 = vand.u32 %v925, 4294901760
        %v927 = vsub.f32 %v925, %v926
        %v928 = vand.u32 %v927, 4294901760
        %929 = vmatpush1.msra.mxu0 %v928
        %930 = vmatprep.subr.mxu0 0.0
        %v931 = vand.u32 %v834, 4294901760
        %v932 = vsub.f32 %v834, %v931
        %v933 = vand.u32 %v932, 4294901760
        %v934 = vsub.f32 %v932, %v933
        %v935 = vand.u32 %v934, 4294901760
        %936 = vmatpush1.msra.mxu0 %v935
        %937 = vmatprep.subr.mxu0 0.0
        %v938 = vand.u32 %v835, 4294901760
        %v939 = vsub.f32 %v835, %v938
        %v940 = vand.u32 %v939, 4294901760
        %v941 = vsub.f32 %v939, %v940
        %v942 = vand.u32 %v941, 4294901760
        %943 = vmatpush1.msra.mxu0 %v942
        %944 = vmatprep.subr.mxu0 0.0
        %v945 = vand.u32 %v836, 4294901760
        %v946 = vsub.f32 %v836, %v945
        %v947 = vand.u32 %v946, 4294901760
        %v948 = vsub.f32 %v946, %v947
        %v949 = vand.u32 %v948, 4294901760
        %950 = vmatpush1.msra.mxu0 %v949
        %951 = vmatprep.subr.mxu0 0.0
        %952 = vmatpush1.msra.mxu0 0.0
        %953 = vmatprep.subr.mxu0 0.0
        %954 = vmatpush1.msra.mxu0 0.0
        %955 = vmatprep.subr.mxu0 0.0
        %956 = vmatpush1.msra.mxu0 0.0
        %957 = vmatprep.subr.mxu0 0.0
        %958 = vmatpush1.msra.mxu0 0.0
        %959 = vmatprep.subr.mxu0 0.0
        %960 = vmatpush1.msra.mxu0 0.0
        %961 = vmatprep.subr.mxu0 0.0
        %962 = vmatpush1.msra.mxu0 0.0
        %963 = vmatprep.subr.mxu0 0.0
        %964 = vmatpush1.msra.mxu0 0.0
        %965 = vmatprep.subr.mxu0 0.0
        %966 = vmatpush1.msra.mxu0 0.0
        %967 = vmatprep.subr.mxu0 0.0
        %968 = vmatpush1.msra.mxu0 0.0
        %969 = vmatprep.subr.mxu0 0.0
        %970 = vmatpush1.msra.mxu0 0.0
        %971 = vmatprep.subr.mxu0 0.0
        %972 = vmatpush1.msra.mxu0 0.0
        %973 = vmatprep.subr.mxu0 0.0
        %974 = vmatpush1.msra.mxu0 0.0
        %975 = vmatprep.subr.mxu0 0.0
        %976 = vmatpush1.msra.mxu0 0.0
        %977 = vmatprep.subr.mxu0 0.0
        %978 = vmatpush1.msra.mxu0 0.0
        %979 = vmatprep.subr.mxu0 0.0
        %980 = vmatpush1.msra.mxu0 0.0
        %981 = vmatprep.subr.mxu0 0.0
        %982 = vmatpush1.msra.mxu0 0.0
        %983 = vmatprep.subr.mxu0 0.0
        %984 = vmatpush1.msra.mxu0 0.0
        %985 = vmatprep.subr.mxu0 0.0
        %986 = vmatpush1.msra.mxu0 0.0
        %987 = vmatprep.subr.mxu0 0.0
        %988 = vmatpush1.msra.mxu0 0.0
        %989 = vmatprep.subr.mxu0 0.0
        %990 = vmatpush1.msra.mxu0 0.0
        %991 = vmatprep.subr.mxu0 0.0
        %992 = vmatpush1.msra.mxu0 0.0
        %993 = vmatprep.subr.mxu0 0.0
        %994 = vmatpush1.msra.mxu0 0.0
        %995 = vmatprep.subr.mxu0 0.0
        %996 = vmatpush1.msra.mxu0 0.0
        %997 = vmatprep.subr.mxu0 0.0
        %998 = vmatpush1.msra.mxu0 0.0
        %999 = vmatprep.subr.mxu0 0.0
        %1000 = vmatpush1.msra.mxu0 0.0
        %1001 = vmatprep.subr.mxu0 0.0
        %1002 = vmatpush1.msra.mxu0 0.0
        %1003 = vmatprep.subr.mxu0 0.0
        %1004 = vmatpush1.msra.mxu0 0.0
        %1005 = vmatprep.subr.mxu0 0.0
        %1006 = vmatpush1.msra.mxu0 0.0
        %1007 = vmatprep.mubr.f32.mxu0 0.0
        %v1008 = vand.u32 %v842, 4294901760
        %1009 = vmatmul.mubr.f32.gmra.mrb[0].mxu0 %v1008
        %v1010 = vpop.f32.mrb[0].mxu0
        %v1011 = vadd.f32 %v920, %v1010
        %v1012 = vpop.f32.mrb[0].mxu0
        %1013 = vdwg.mxu0
        %1014 = vmatprep.subr.mxu0 0.0
        %v1015 = vand.u32 %v833, 4294901760
        %v1016 = vsub.f32 %v833, %v1015
        %1017 = vmatpush1.msra.mxu0 %v1016
        %1018 = vmatprep.subr.mxu0 0.0
        %v1019 = vand.u32 %v834, 4294901760
        %v1020 = vsub.f32 %v834, %v1019
        %1021 = vmatpush1.msra.mxu0 %v1020
        %1022 = vmatprep.subr.mxu0 0.0
        %v1023 = vand.u32 %v835, 4294901760
        %v1024 = vsub.f32 %v835, %v1023
        %1025 = vmatpush1.msra.mxu0 %v1024
        %1026 = vmatprep.subr.mxu0 0.0
        %v1027 = vand.u32 %v836, 4294901760
        %v1028 = vsub.f32 %v836, %v1027
        %1029 = vmatpush1.msra.mxu0 %v1028
        %1030 = vmatprep.subr.mxu0 0.0
        %1031 = vmatpush1.msra.mxu0 0.0
        %1032 = vmatprep.subr.mxu0 0.0
        %1033 = vmatpush1.msra.mxu0 0.0
        %1034 = vmatprep.subr.mxu0 0.0
        %1035 = vmatpush1.msra.mxu0 0.0
        %1036 = vmatprep.subr.mxu0 0.0
        %1037 = vmatpush1.msra.mxu0 0.0
        %1038 = vmatprep.subr.mxu0 0.0
        %1039 = vmatpush1.msra.mxu0 0.0
        %1040 = vmatprep.subr.mxu0 0.0
        %1041 = vmatpush1.msra.mxu0 0.0
        %1042 = vmatprep.subr.mxu0 0.0
        %1043 = vmatpush1.msra.mxu0 0.0
        %1044 = vmatprep.subr.mxu0 0.0
        %1045 = vmatpush1.msra.mxu0 0.0
        %1046 = vmatprep.subr.mxu0 0.0
        %1047 = vmatpush1.msra.mxu0 0.0
        %1048 = vmatprep.subr.mxu0 0.0
        %1049 = vmatpush1.msra.mxu0 0.0
        %1050 = vmatprep.subr.mxu0 0.0
        %1051 = vmatpush1.msra.mxu0 0.0
        %1052 = vmatprep.subr.mxu0 0.0
        %1053 = vmatpush1.msra.mxu0 0.0
        %1054 = vmatprep.subr.mxu0 0.0
        %1055 = vmatpush1.msra.mxu0 0.0
        %1056 = vmatprep.subr.mxu0 0.0
        %1057 = vmatpush1.msra.mxu0 0.0
        %1058 = vmatprep.subr.mxu0 0.0
        %1059 = vmatpush1.msra.mxu0 0.0
        %1060 = vmatprep.subr.mxu0 0.0
        %1061 = vmatpush1.msra.mxu0 0.0
        %1062 = vmatprep.subr.mxu0 0.0
        %1063 = vmatpush1.msra.mxu0 0.0
        %1064 = vmatprep.subr.mxu0 0.0
        %1065 = vmatpush1.msra.mxu0 0.0
        %1066 = vmatprep.subr.mxu0 0.0
        %1067 = vmatpush1.msra.mxu0 0.0
        %1068 = vmatprep.subr.mxu0 0.0
        %1069 = vmatpush1.msra.mxu0 0.0
        %1070 = vmatprep.subr.mxu0 0.0
        %1071 = vmatpush1.msra.mxu0 0.0
        %1072 = vmatprep.subr.mxu0 0.0
        %1073 = vmatpush1.msra.mxu0 0.0
        %1074 = vmatprep.subr.mxu0 0.0
        %1075 = vmatpush1.msra.mxu0 0.0
        %1076 = vmatprep.subr.mxu0 0.0
        %1077 = vmatpush1.msra.mxu0 0.0
        %1078 = vmatprep.subr.mxu0 0.0
        %1079 = vmatpush1.msra.mxu0 0.0
        %1080 = vmatprep.subr.mxu0 0.0
        %1081 = vmatpush1.msra.mxu0 0.0
        %1082 = vmatprep.subr.mxu0 0.0
        %1083 = vmatpush1.msra.mxu0 0.0
        %1084 = vmatprep.subr.mxu0 0.0
        %1085 = vmatpush1.msra.mxu0 0.0
        %1086 = vmatprep.mubr.f32.mxu0 0.0
        %v1087 = vand.u32 %v842, 4294901760
        %v1088 = vsub.f32 %v842, %v1087
        %1089 = vmatmul.mubr.f32.gmra.mrb[0].mxu0 %v1088
        %v1090 = vpop.f32.mrb[0].mxu0
        %v1091 = vadd.f32 %v1011, %v1090
        %v1092 = vpop.f32.mrb[0].mxu0
        %1093 = vdwg.mxu0
        %1094 = vmatprep.subr.mxu0 0.0
        %v1095 = vand.u32 %v833, 4294901760
        %1096 = vmatpush1.msra.mxu0 %v1095
        %1097 = vmatprep.subr.mxu0 0.0
        %v1098 = vand.u32 %v834, 4294901760
        %1099 = vmatpush1.msra.mxu0 %v1098
        %1100 = vmatprep.subr.mxu0 0.0
        %v1101 = vand.u32 %v835, 4294901760
        %1102 = vmatpush1.msra.mxu0 %v1101
        %1103 = vmatprep.subr.mxu0 0.0
        %v1104 = vand.u32 %v836, 4294901760
        %1105 = vmatpush1.msra.mxu0 %v1104
        %1106 = vmatprep.subr.mxu0 0.0
        %1107 = vmatpush1.msra.mxu0 0.0
        %1108 = vmatprep.subr.mxu0 0.0
        %1109 = vmatpush1.msra.mxu0 0.0
        %1110 = vmatprep.subr.mxu0 0.0
        %1111 = vmatpush1.msra.mxu0 0.0
        %1112 = vmatprep.subr.mxu0 0.0
        %1113 = vmatpush1.msra.mxu0 0.0
        %1114 = vmatprep.subr.mxu0 0.0
        %1115 = vmatpush1.msra.mxu0 0.0
        %1116 = vmatprep.subr.mxu0 0.0
        %1117 = vmatpush1.msra.mxu0 0.0
        %1118 = vmatprep.subr.mxu0 0.0
        %1119 = vmatpush1.msra.mxu0 0.0
        %1120 = vmatprep.subr.mxu0 0.0
        %1121 = vmatpush1.msra.mxu0 0.0
        %1122 = vmatprep.subr.mxu0 0.0
        %1123 = vmatpush1.msra.mxu0 0.0
        %1124 = vmatprep.subr.mxu0 0.0
        %1125 = vmatpush1.msra.mxu0 0.0
        %1126 = vmatprep.subr.mxu0 0.0
        %1127 = vmatpush1.msra.mxu0 0.0
        %1128 = vmatprep.subr.mxu0 0.0
        %1129 = vmatpush1.msra.mxu0 0.0
        %1130 = vmatprep.subr.mxu0 0.0
        %1131 = vmatpush1.msra.mxu0 0.0
        %1132 = vmatprep.subr.mxu0 0.0
        %1133 = vmatpush1.msra.mxu0 0.0
        %1134 = vmatprep.subr.mxu0 0.0
        %1135 = vmatpush1.msra.mxu0 0.0
        %1136 = vmatprep.subr.mxu0 0.0
        %1137 = vmatpush1.msra.mxu0 0.0
        %1138 = vmatprep.subr.mxu0 0.0
        %1139 = vmatpush1.msra.mxu0 0.0
        %1140 = vmatprep.subr.mxu0 0.0
        %1141 = vmatpush1.msra.mxu0 0.0
        %1142 = vmatprep.subr.mxu0 0.0
        %1143 = vmatpush1.msra.mxu0 0.0
        %1144 = vmatprep.subr.mxu0 0.0
        %1145 = vmatpush1.msra.mxu0 0.0
        %1146 = vmatprep.subr.mxu0 0.0
        %1147 = vmatpush1.msra.mxu0 0.0
        %1148 = vmatprep.subr.mxu0 0.0
        %1149 = vmatpush1.msra.mxu0 0.0
        %1150 = vmatprep.subr.mxu0 0.0
        %1151 = vmatpush1.msra.mxu0 0.0
        %1152 = vmatprep.subr.mxu0 0.0
        %1153 = vmatpush1.msra.mxu0 0.0
        %1154 = vmatprep.subr.mxu0 0.0
        %1155 = vmatpush1.msra.mxu0 0.0
        %1156 = vmatprep.subr.mxu0 0.0
        %1157 = vmatpush1.msra.mxu0 0.0
        %1158 = vmatprep.subr.mxu0 0.0
        %1159 = vmatpush1.msra.mxu0 0.0
        %1160 = vmatprep.subr.mxu0 0.0
        %1161 = vmatpush1.msra.mxu0 0.0
        %1162 = vmatprep.mubr.f32.mxu0 0.0
        %v1163 = vand.u32 %v842, 4294901760
        %v1164 = vsub.f32 %v842, %v1163
        %v1165 = vand.u32 %v1164, 4294901760
        %1166 = vmatmul.mubr.f32.gmra.mrb[0].mxu0 %v1165
        %v1167 = vpop.f32.mrb[0].mxu0
        %v1168 = vadd.f32 %v1091, %v1167
        %v1169 = vpop.f32.mrb[0].mxu0
        %1170 = vdwg.mxu0
        %1171 = vmatprep.subr.mxu0 0.0
        %v1172 = vand.u32 %v833, 4294901760
        %v1173 = vsub.f32 %v833, %v1172
        %v1174 = vand.u32 %v1173, 4294901760
        %1175 = vmatpush1.msra.mxu0 %v1174
        %1176 = vmatprep.subr.mxu0 0.0
        %v1177 = vand.u32 %v834, 4294901760
        %v1178 = vsub.f32 %v834, %v1177
        %v1179 = vand.u32 %v1178, 4294901760
        %1180 = vmatpush1.msra.mxu0 %v1179
        %1181 = vmatprep.subr.mxu0 0.0
        %v1182 = vand.u32 %v835, 4294901760
        %v1183 = vsub.f32 %v835, %v1182
        %v1184 = vand.u32 %v1183, 4294901760
        %1185 = vmatpush1.msra.mxu0 %v1184
        %1186 = vmatprep.subr.mxu0 0.0
        %v1187 = vand.u32 %v836, 4294901760
        %v1188 = vsub.f32 %v836, %v1187
        %v1189 = vand.u32 %v1188, 4294901760
        %1190 = vmatpush1.msra.mxu0 %v1189
        %1191 = vmatprep.subr.mxu0 0.0
        %1192 = vmatpush1.msra.mxu0 0.0
        %1193 = vmatprep.subr.mxu0 0.0
        %1194 = vmatpush1.msra.mxu0 0.0
        %1195 = vmatprep.subr.mxu0 0.0
        %1196 = vmatpush1.msra.mxu0 0.0
        %1197 = vmatprep.subr.mxu0 0.0
        %1198 = vmatpush1.msra.mxu0 0.0
        %1199 = vmatprep.subr.mxu0 0.0
        %1200 = vmatpush1.msra.mxu0 0.0
        %1201 = vmatprep.subr.mxu0 0.0
        %1202 = vmatpush1.msra.mxu0 0.0
        %1203 = vmatprep.subr.mxu0 0.0
        %1204 = vmatpush1.msra.mxu0 0.0
        %1205 = vmatprep.subr.mxu0 0.0
        %1206 = vmatpush1.msra.mxu0 0.0
        %1207 = vmatprep.subr.mxu0 0.0
        %1208 = vmatpush1.msra.mxu0 0.0
        %1209 = vmatprep.subr.mxu0 0.0
        %1210 = vmatpush1.msra.mxu0 0.0
        %1211 = vmatprep.subr.mxu0 0.0
        %1212 = vmatpush1.msra.mxu0 0.0
        %1213 = vmatprep.subr.mxu0 0.0
        %1214 = vmatpush1.msra.mxu0 0.0
        %1215 = vmatprep.subr.mxu0 0.0
        %1216 = vmatpush1.msra.mxu0 0.0
        %1217 = vmatprep.subr.mxu0 0.0
        %1218 = vmatpush1.msra.mxu0 0.0
        %1219 = vmatprep.subr.mxu0 0.0
        %1220 = vmatpush1.msra.mxu0 0.0
        %1221 = vmatprep.subr.mxu0 0.0
        %1222 = vmatpush1.msra.mxu0 0.0
        %1223 = vmatprep.subr.mxu0 0.0
        %1224 = vmatpush1.msra.mxu0 0.0
        %1225 = vmatprep.subr.mxu0 0.0
        %1226 = vmatpush1.msra.mxu0 0.0
        %1227 = vmatprep.subr.mxu0 0.0
        %1228 = vmatpush1.msra.mxu0 0.0
        %1229 = vmatprep.subr.mxu0 0.0
        %1230 = vmatpush1.msra.mxu0 0.0
        %1231 = vmatprep.subr.mxu0 0.0
        %1232 = vmatpush1.msra.mxu0 0.0
        %1233 = vmatprep.subr.mxu0 0.0
        %1234 = vmatpush1.msra.mxu0 0.0
        %1235 = vmatprep.subr.mxu0 0.0
        %1236 = vmatpush1.msra.mxu0 0.0
        %1237 = vmatprep.subr.mxu0 0.0
        %1238 = vmatpush1.msra.mxu0 0.0
        %1239 = vmatprep.subr.mxu0 0.0
        %1240 = vmatpush1.msra.mxu0 0.0
        %1241 = vmatprep.subr.mxu0 0.0
        %1242 = vmatpush1.msra.mxu0 0.0
        %1243 = vmatprep.subr.mxu0 0.0
        %1244 = vmatpush1.msra.mxu0 0.0
        %1245 = vmatprep.subr.mxu0 0.0
        %1246 = vmatpush1.msra.mxu0 0.0
        %1247 = vmatprep.mubr.f32.mxu0 0.0
        %v1248 = vand.u32 %v842, 4294901760
        %1249 = vmatmul.mubr.f32.gmra.mrb[0].mxu0 %v1248
        %v1250 = vpop.f32.mrb[0].mxu0
        %v1251 = vadd.f32 %v1168, %v1250
        %v1252 = vpop.f32.mrb[0].mxu0
        %1253 = vdwg.mxu0
        %1254 = vmatprep.subr.mxu0 0.0
        %v1255 = vand.u32 %v833, 4294901760
        %1256 = vmatpush1.msra.mxu0 %v1255
        %1257 = vmatprep.subr.mxu0 0.0
        %v1258 = vand.u32 %v834, 4294901760
        %1259 = vmatpush1.msra.mxu0 %v1258
        %1260 = vmatprep.subr.mxu0 0.0
        %v1261 = vand.u32 %v835, 4294901760
        %1262 = vmatpush1.msra.mxu0 %v1261
        %1263 = vmatprep.subr.mxu0 0.0
        %v1264 = vand.u32 %v836, 4294901760
        %1265 = vmatpush1.msra.mxu0 %v1264
        %1266 = vmatprep.subr.mxu0 0.0
        %1267 = vmatpush1.msra.mxu0 0.0
        %1268 = vmatprep.subr.mxu0 0.0
        %1269 = vmatpush1.msra.mxu0 0.0
        %1270 = vmatprep.subr.mxu0 0.0
        %1271 = vmatpush1.msra.mxu0 0.0
        %1272 = vmatprep.subr.mxu0 0.0
        %1273 = vmatpush1.msra.mxu0 0.0
        %1274 = vmatprep.subr.mxu0 0.0
        %1275 = vmatpush1.msra.mxu0 0.0
        %1276 = vmatprep.subr.mxu0 0.0
        %1277 = vmatpush1.msra.mxu0 0.0
        %1278 = vmatprep.subr.mxu0 0.0
        %1279 = vmatpush1.msra.mxu0 0.0
        %1280 = vmatprep.subr.mxu0 0.0
        %1281 = vmatpush1.msra.mxu0 0.0
        %1282 = vmatprep.subr.mxu0 0.0
        %1283 = vmatpush1.msra.mxu0 0.0
        %1284 = vmatprep.subr.mxu0 0.0
        %1285 = vmatpush1.msra.mxu0 0.0
        %1286 = vmatprep.subr.mxu0 0.0
        %1287 = vmatpush1.msra.mxu0 0.0
        %1288 = vmatprep.subr.mxu0 0.0
        %1289 = vmatpush1.msra.mxu0 0.0
        %1290 = vmatprep.subr.mxu0 0.0
        %1291 = vmatpush1.msra.mxu0 0.0
        %1292 = vmatprep.subr.mxu0 0.0
        %1293 = vmatpush1.msra.mxu0 0.0
        %1294 = vmatprep.subr.mxu0 0.0
        %1295 = vmatpush1.msra.mxu0 0.0
        %1296 = vmatprep.subr.mxu0 0.0
        %1297 = vmatpush1.msra.mxu0 0.0
        %1298 = vmatprep.subr.mxu0 0.0
        %1299 = vmatpush1.msra.mxu0 0.0
        %1300 = vmatprep.subr.mxu0 0.0
        %1301 = vmatpush1.msra.mxu0 0.0
        %1302 = vmatprep.subr.mxu0 0.0
        %1303 = vmatpush1.msra.mxu0 0.0
        %1304 = vmatprep.subr.mxu0 0.0
        %1305 = vmatpush1.msra.mxu0 0.0
        %1306 = vmatprep.subr.mxu0 0.0
        %1307 = vmatpush1.msra.mxu0 0.0
        %1308 = vmatprep.subr.mxu0 0.0
        %1309 = vmatpush1.msra.mxu0 0.0
        %1310 = vmatprep.subr.mxu0 0.0
        %1311 = vmatpush1.msra.mxu0 0.0
        %1312 = vmatprep.subr.mxu0 0.0
        %1313 = vmatpush1.msra.mxu0 0.0
        %1314 = vmatprep.subr.mxu0 0.0
        %1315 = vmatpush1.msra.mxu0 0.0
        %1316 = vmatprep.subr.mxu0 0.0
        %1317 = vmatpush1.msra.mxu0 0.0
        %1318 = vmatprep.subr.mxu0 0.0
        %1319 = vmatpush1.msra.mxu0 0.0
        %1320 = vmatprep.subr.mxu0 0.0
        %1321 = vmatpush1.msra.mxu0 0.0
        %1322 = vmatprep.mubr.f32.mxu0 0.0
        %v1323 = vand.u32 %v842, 4294901760
        %1324 = vmatmul.mubr.f32.gmra.mrb[0].mxu0 %v1323
        %v1325 = vpop.f32.mrb[0].mxu0
        %v1326 = vadd.f32 %v1251, %v1325
        %v1327 = vpop.f32.mrb[0].mxu0
        %1328 = vdwg.mxu0
        %vm1329 = vcmp.gt.f32.partialorder %v1326, 0.0
        %v1330 = vmin.f32 %v1326, 0.0
        %v1331 = vmul.f32 %v1330, 1.442695
        %v1332 = vpow.pop %v1331
        %v1333 = vsub.f32 %v1332, 1.0
        %v1334 = vsel %vm1329, %v1326, %v1333
        %v1335 = vld [vmem:[#allocation9] sm:$0xff]
        %v1336 = vld [vmem:[#allocation9 + $0x8] sm:$0xff]
        %v1337 = vld [vmem:[#allocation9 + $0x10] sm:$0xff]
        %v1338 = vld [vmem:[#allocation9 + $0x18] sm:$0xff]
        %1339 = vrot.lane.b32.xlu0 %v362, 64
        %v1340 = vpop.permute.xlu0 %1339
        %v1343 = vsel %vm840, %v1334, 0
        %1345 = vmatprep.subr.mxu0 0.0
        %v1346 = vand.u32 %v1335, 4294901760
        %1347 = vmatpush1.msra.mxu0 %v1346
        %1348 = vmatprep.subr.mxu0 0.0
        %v1349 = vand.u32 %v1336, 4294901760
        %1350 = vmatpush1.msra.mxu0 %v1349
        %1351 = vmatprep.subr.mxu0 0.0
        %v1352 = vand.u32 %v1337, 4294901760
        %1353 = vmatpush1.msra.mxu0 %v1352
        %1354 = vmatprep.subr.mxu0 0.0
        %v1355 = vand.u32 %v1338, 4294901760
        %1356 = vmatpush1.msra.mxu0 %v1355
        %1357 = vmatprep.subr.mxu0 0.0
        %1358 = vmatpush1.msra.mxu0 0.0
        %1359 = vmatprep.subr.mxu0 0.0
        %1360 = vmatpush1.msra.mxu0 0.0
        %1361 = vmatprep.subr.mxu0 0.0
        %1362 = vmatpush1.msra.mxu0 0.0
        %1363 = vmatprep.subr.mxu0 0.0
        %1364 = vmatpush1.msra.mxu0 0.0
        %1365 = vmatprep.subr.mxu0 0.0
        %1366 = vmatpush1.msra.mxu0 0.0
        %1367 = vmatprep.subr.mxu0 0.0
        %1368 = vmatpush1.msra.mxu0 0.0
        %1369 = vmatprep.subr.mxu0 0.0
        %1370 = vmatpush1.msra.mxu0 0.0
        %1371 = vmatprep.subr.mxu0 0.0
        %1372 = vmatpush1.msra.mxu0 0.0
        %1373 = vmatprep.subr.mxu0 0.0
        %1374 = vmatpush1.msra.mxu0 0.0
        %1375 = vmatprep.subr.mxu0 0.0
        %1376 = vmatpush1.msra.mxu0 0.0
        %1377 = vmatprep.subr.mxu0 0.0
        %1378 = vmatpush1.msra.mxu0 0.0
        %1379 = vmatprep.subr.mxu0 0.0
        %1380 = vmatpush1.msra.mxu0 0.0
        %1381 = vmatprep.subr.mxu0 0.0
        %1382 = vmatpush1.msra.mxu0 0.0
        %1383 = vmatprep.subr.mxu0 0.0
        %1384 = vmatpush1.msra.mxu0 0.0
        %1385 = vmatprep.subr.mxu0 0.0
        %1386 = vmatpush1.msra.mxu0 0.0
        %1387 = vmatprep.subr.mxu0 0.0
        %1388 = vmatpush1.msra.mxu0 0.0
        %1389 = vmatprep.subr.mxu0 0.0
        %1390 = vmatpush1.msra.mxu0 0.0
        %1391 = vmatprep.subr.mxu0 0.0
        %1392 = vmatpush1.msra.mxu0 0.0
        %1393 = vmatprep.subr.mxu0 0.0
        %1394 = vmatpush1.msra.mxu0 0.0
        %1395 = vmatprep.subr.mxu0 0.0
        %1396 = vmatpush1.msra.mxu0 0.0
        %1397 = vmatprep.subr.mxu0 0.0
        %1398 = vmatpush1.msra.mxu0 0.0
        %1399 = vmatprep.subr.mxu0 0.0
        %1400 = vmatpush1.msra.mxu0 0.0
        %1401 = vmatprep.subr.mxu0 0.0
        %1402 = vmatpush1.msra.mxu0 0.0
        %1403 = vmatprep.subr.mxu0 0.0
        %1404 = vmatpush1.msra.mxu0 0.0
        %1405 = vmatprep.subr.mxu0 0.0
        %1406 = vmatpush1.msra.mxu0 0.0
        %1407 = vmatprep.subr.mxu0 0.0
        %1408 = vmatpush1.msra.mxu0 0.0
        %1409 = vmatprep.subr.mxu0 0.0
        %1410 = vmatpush1.msra.mxu0 0.0
        %1411 = vmatprep.subr.mxu0 0.0
        %1412 = vmatpush1.msra.mxu0 0.0
        %1413 = vmatprep.mubr.f32.mxu0 0.0
        %v1414 = vand.u32 %v1343, 4294901760
        %v1415 = vsub.f32 %v1343, %v1414
        %v1416 = vand.u32 %v1415, 4294901760
        %v1417 = vsub.f32 %v1415, %v1416
        %v1418 = vand.u32 %v1417, 4294901760
        %1419 = vmatmul.mubr.f32.gmra.mrb[0].mxu0 %v1418
        %v1420 = vpop.f32.mrb[0].mxu0
        %v1421 = vadd.f32 %v1340, %v1420
        %v1422 = vpop.f32.mrb[0].mxu0
        %1423 = vdwg.mxu0
        %1424 = vmatprep.subr.mxu0 0.0
        %v1425 = vand.u32 %v1335, 4294901760
        %v1426 = vsub.f32 %v1335, %v1425
        %v1427 = vand.u32 %v1426, 4294901760
        %v1428 = vsub.f32 %v1426, %v1427
        %v1429 = vand.u32 %v1428, 4294901760
        %1430 = vmatpush1.msra.mxu0 %v1429
        %1431 = vmatprep.subr.mxu0 0.0
        %v1432 = vand.u32 %v1336, 4294901760
        %v1433 = vsub.f32 %v1336, %v1432
        %v1434 = vand.u32 %v1433, 4294901760
        %v1435 = vsub.f32 %v1433, %v1434
        %v1436 = vand.u32 %v1435, 4294901760
        %1437 = vmatpush1.msra.mxu0 %v1436
        %1438 = vmatprep.subr.mxu0 0.0
        %v1439 = vand.u32 %v1337, 4294901760
        %v1440 = vsub.f32 %v1337, %v1439
        %v1441 = vand.u32 %v1440, 4294901760
        %v1442 = vsub.f32 %v1440, %v1441
        %v1443 = vand.u32 %v1442, 4294901760
        %1444 = vmatpush1.msra.mxu0 %v1443
        %1445 = vmatprep.subr.mxu0 0.0
        %v1446 = vand.u32 %v1338, 4294901760
        %v1447 = vsub.f32 %v1338, %v1446
        %v1448 = vand.u32 %v1447, 4294901760
        %v1449 = vsub.f32 %v1447, %v1448
        %v1450 = vand.u32 %v1449, 4294901760
        %1451 = vmatpush1.msra.mxu0 %v1450
        %1452 = vmatprep.subr.mxu0 0.0
        %1453 = vmatpush1.msra.mxu0 0.0
        %1454 = vmatprep.subr.mxu0 0.0
        %1455 = vmatpush1.msra.mxu0 0.0
        %1456 = vmatprep.subr.mxu0 0.0
        %1457 = vmatpush1.msra.mxu0 0.0
        %1458 = vmatprep.subr.mxu0 0.0
        %1459 = vmatpush1.msra.mxu0 0.0
        %1460 = vmatprep.subr.mxu0 0.0
        %1461 = vmatpush1.msra.mxu0 0.0
        %1462 = vmatprep.subr.mxu0 0.0
        %1463 = vmatpush1.msra.mxu0 0.0
        %1464 = vmatprep.subr.mxu0 0.0
        %1465 = vmatpush1.msra.mxu0 0.0
        %1466 = vmatprep.subr.mxu0 0.0
        %1467 = vmatpush1.msra.mxu0 0.0
        %1468 = vmatprep.subr.mxu0 0.0
        %1469 = vmatpush1.msra.mxu0 0.0
        %1470 = vmatprep.subr.mxu0 0.0
        %1471 = vmatpush1.msra.mxu0 0.0
        %1472 = vmatprep.subr.mxu0 0.0
        %1473 = vmatpush1.msra.mxu0 0.0
        %1474 = vmatprep.subr.mxu0 0.0
        %1475 = vmatpush1.msra.mxu0 0.0
        %1476 = vmatprep.subr.mxu0 0.0
        %1477 = vmatpush1.msra.mxu0 0.0
        %1478 = vmatprep.subr.mxu0 0.0
        %1479 = vmatpush1.msra.mxu0 0.0
        %1480 = vmatprep.subr.mxu0 0.0
        %1481 = vmatpush1.msra.mxu0 0.0
        %1482 = vmatprep.subr.mxu0 0.0
        %1483 = vmatpush1.msra.mxu0 0.0
        %1484 = vmatprep.subr.mxu0 0.0
        %1485 = vmatpush1.msra.mxu0 0.0
        %1486 = vmatprep.subr.mxu0 0.0
        %1487 = vmatpush1.msra.mxu0 0.0
        %1488 = vmatprep.subr.mxu0 0.0
        %1489 = vmatpush1.msra.mxu0 0.0
        %1490 = vmatprep.subr.mxu0 0.0
        %1491 = vmatpush1.msra.mxu0 0.0
        %1492 = vmatprep.subr.mxu0 0.0
        %1493 = vmatpush1.msra.mxu0 0.0
        %1494 = vmatprep.subr.mxu0 0.0
        %1495 = vmatpush1.msra.mxu0 0.0
        %1496 = vmatprep.subr.mxu0 0.0
        %1497 = vmatpush1.msra.mxu0 0.0
        %1498 = vmatprep.subr.mxu0 0.0
        %1499 = vmatpush1.msra.mxu0 0.0
        %1500 = vmatprep.subr.mxu0 0.0
        %1501 = vmatpush1.msra.mxu0 0.0
        %1502 = vmatprep.subr.mxu0 0.0
        %1503 = vmatpush1.msra.mxu0 0.0
        %1504 = vmatprep.subr.mxu0 0.0
        %1505 = vmatpush1.msra.mxu0 0.0
        %1506 = vmatprep.subr.mxu0 0.0
        %1507 = vmatpush1.msra.mxu0 0.0
        %1508 = vmatprep.mubr.f32.mxu0 0.0
        %v1509 = vand.u32 %v1343, 4294901760
        %1510 = vmatmul.mubr.f32.gmra.mrb[0].mxu0 %v1509
        %v1511 = vpop.f32.mrb[0].mxu0
        %v1512 = vadd.f32 %v1421, %v1511
        %v1513 = vpop.f32.mrb[0].mxu0
        %1514 = vdwg.mxu0
        %1515 = vmatprep.subr.mxu0 0.0
        %v1516 = vand.u32 %v1335, 4294901760
        %v1517 = vsub.f32 %v1335, %v1516
        %1518 = vmatpush1.msra.mxu0 %v1517
        %1519 = vmatprep.subr.mxu0 0.0
        %v1520 = vand.u32 %v1336, 4294901760
        %v1521 = vsub.f32 %v1336, %v1520
        %1522 = vmatpush1.msra.mxu0 %v1521
        %1523 = vmatprep.subr.mxu0 0.0
        %v1524 = vand.u32 %v1337, 4294901760
        %v1525 = vsub.f32 %v1337, %v1524
        %1526 = vmatpush1.msra.mxu0 %v1525
        %1527 = vmatprep.subr.mxu0 0.0
        %v1528 = vand.u32 %v1338, 4294901760
        %v1529 = vsub.f32 %v1338, %v1528
        %1530 = vmatpush1.msra.mxu0 %v1529
        %1531 = vmatprep.subr.mxu0 0.0
        %1532 = vmatpush1.msra.mxu0 0.0
        %1533 = vmatprep.subr.mxu0 0.0
        %1534 = vmatpush1.msra.mxu0 0.0
        %1535 = vmatprep.subr.mxu0 0.0
        %1536 = vmatpush1.msra.mxu0 0.0
        %1537 = vmatprep.subr.mxu0 0.0
        %1538 = vmatpush1.msra.mxu0 0.0
        %1539 = vmatprep.subr.mxu0 0.0
        %1540 = vmatpush1.msra.mxu0 0.0
        %1541 = vmatprep.subr.mxu0 0.0
        %1542 = vmatpush1.msra.mxu0 0.0
        %1543 = vmatprep.subr.mxu0 0.0
        %1544 = vmatpush1.msra.mxu0 0.0
        %1545 = vmatprep.subr.mxu0 0.0
        %1546 = vmatpush1.msra.mxu0 0.0
        %1547 = vmatprep.subr.mxu0 0.0
        %1548 = vmatpush1.msra.mxu0 0.0
        %1549 = vmatprep.subr.mxu0 0.0
        %1550 = vmatpush1.msra.mxu0 0.0
        %1551 = vmatprep.subr.mxu0 0.0
        %1552 = vmatpush1.msra.mxu0 0.0
        %1553 = vmatprep.subr.mxu0 0.0
        %1554 = vmatpush1.msra.mxu0 0.0
        %1555 = vmatprep.subr.mxu0 0.0
        %1556 = vmatpush1.msra.mxu0 0.0
        %1557 = vmatprep.subr.mxu0 0.0
        %1558 = vmatpush1.msra.mxu0 0.0
        %1559 = vmatprep.subr.mxu0 0.0
        %1560 = vmatpush1.msra.mxu0 0.0
        %1561 = vmatprep.subr.mxu0 0.0
        %1562 = vmatpush1.msra.mxu0 0.0
        %1563 = vmatprep.subr.mxu0 0.0
        %1564 = vmatpush1.msra.mxu0 0.0
        %1565 = vmatprep.subr.mxu0 0.0
        %1566 = vmatpush1.msra.mxu0 0.0
        %1567 = vmatprep.subr.mxu0 0.0
        %1568 = vmatpush1.msra.mxu0 0.0
        %1569 = vmatprep.subr.mxu0 0.0
        %1570 = vmatpush1.msra.mxu0 0.0
        %1571 = vmatprep.subr.mxu0 0.0
        %1572 = vmatpush1.msra.mxu0 0.0
        %1573 = vmatprep.subr.mxu0 0.0
        %1574 = vmatpush1.msra.mxu0 0.0
        %1575 = vmatprep.subr.mxu0 0.0
        %1576 = vmatpush1.msra.mxu0 0.0
        %1577 = vmatprep.subr.mxu0 0.0
        %1578 = vmatpush1.msra.mxu0 0.0
        %1579 = vmatprep.subr.mxu0 0.0
        %1580 = vmatpush1.msra.mxu0 0.0
        %1581 = vmatprep.subr.mxu0 0.0
        %1582 = vmatpush1.msra.mxu0 0.0
        %1583 = vmatprep.subr.mxu0 0.0
        %1584 = vmatpush1.msra.mxu0 0.0
        %1585 = vmatprep.subr.mxu0 0.0
        %1586 = vmatpush1.msra.mxu0 0.0
        %1587 = vmatprep.mubr.f32.mxu0 0.0
        %v1588 = vand.u32 %v1343, 4294901760
        %v1589 = vsub.f32 %v1343, %v1588
        %1590 = vmatmul.mubr.f32.gmra.mrb[0].mxu0 %v1589
        %v1591 = vpop.f32.mrb[0].mxu0
        %v1592 = vadd.f32 %v1512, %v1591
        %v1593 = vpop.f32.mrb[0].mxu0
        %1594 = vdwg.mxu0
        %1595 = vmatprep.subr.mxu0 0.0
        %v1596 = vand.u32 %v1335, 4294901760
        %1597 = vmatpush1.msra.mxu0 %v1596
        %1598 = vmatprep.subr.mxu0 0.0
        %v1599 = vand.u32 %v1336, 4294901760
        %1600 = vmatpush1.msra.mxu0 %v1599
        %1601 = vmatprep.subr.mxu0 0.0
        %v1602 = vand.u32 %v1337, 4294901760
        %1603 = vmatpush1.msra.mxu0 %v1602
        %1604 = vmatprep.subr.mxu0 0.0
        %v1605 = vand.u32 %v1338, 4294901760
        %1606 = vmatpush1.msra.mxu0 %v1605
        %1607 = vmatprep.subr.mxu0 0.0
        %1608 = vmatpush1.msra.mxu0 0.0
        %1609 = vmatprep.subr.mxu0 0.0
        %1610 = vmatpush1.msra.mxu0 0.0
        %1611 = vmatprep.subr.mxu0 0.0
        %1612 = vmatpush1.msra.mxu0 0.0
        %1613 = vmatprep.subr.mxu0 0.0
        %1614 = vmatpush1.msra.mxu0 0.0
        %1615 = vmatprep.subr.mxu0 0.0
        %1616 = vmatpush1.msra.mxu0 0.0
        %1617 = vmatprep.subr.mxu0 0.0
        %1618 = vmatpush1.msra.mxu0 0.0
        %1619 = vmatprep.subr.mxu0 0.0
        %1620 = vmatpush1.msra.mxu0 0.0
        %1621 = vmatprep.subr.mxu0 0.0
        %1622 = vmatpush1.msra.mxu0 0.0
        %1623 = vmatprep.subr.mxu0 0.0
        %1624 = vmatpush1.msra.mxu0 0.0
        %1625 = vmatprep.subr.mxu0 0.0
        %1626 = vmatpush1.msra.mxu0 0.0
        %1627 = vmatprep.subr.mxu0 0.0
        %1628 = vmatpush1.msra.mxu0 0.0
        %1629 = vmatprep.subr.mxu0 0.0
        %1630 = vmatpush1.msra.mxu0 0.0
        %1631 = vmatprep.subr.mxu0 0.0
        %1632 = vmatpush1.msra.mxu0 0.0
        %1633 = vmatprep.subr.mxu0 0.0
        %1634 = vmatpush1.msra.mxu0 0.0
        %1635 = vmatprep.subr.mxu0 0.0
        %1636 = vmatpush1.msra.mxu0 0.0
        %1637 = vmatprep.subr.mxu0 0.0
        %1638 = vmatpush1.msra.mxu0 0.0
        %1639 = vmatprep.subr.mxu0 0.0
        %1640 = vmatpush1.msra.mxu0 0.0
        %1641 = vmatprep.subr.mxu0 0.0
        %1642 = vmatpush1.msra.mxu0 0.0
        %1643 = vmatprep.subr.mxu0 0.0
        %1644 = vmatpush1.msra.mxu0 0.0
        %1645 = vmatprep.subr.mxu0 0.0
        %1646 = vmatpush1.msra.mxu0 0.0
        %1647 = vmatprep.subr.mxu0 0.0
        %1648 = vmatpush1.msra.mxu0 0.0
        %1649 = vmatprep.subr.mxu0 0.0
        %1650 = vmatpush1.msra.mxu0 0.0
        %1651 = vmatprep.subr.mxu0 0.0
        %1652 = vmatpush1.msra.mxu0 0.0
        %1653 = vmatprep.subr.mxu0 0.0
        %1654 = vmatpush1.msra.mxu0 0.0
        %1655 = vmatprep.subr.mxu0 0.0
        %1656 = vmatpush1.msra.mxu0 0.0
        %1657 = vmatprep.subr.mxu0 0.0
        %1658 = vmatpush1.msra.mxu0 0.0
        %1659 = vmatprep.subr.mxu0 0.0
        %1660 = vmatpush1.msra.mxu0 0.0
        %1661 = vmatprep.subr.mxu0 0.0
        %1662 = vmatpush1.msra.mxu0 0.0
        %1663 = vmatprep.mubr.f32.mxu0 0.0
        %v1664 = vand.u32 %v1343, 4294901760
        %v1665 = vsub.f32 %v1343, %v1664
        %v1666 = vand.u32 %v1665, 4294901760
        %1667 = vmatmul.mubr.f32.gmra.mrb[0].mxu0 %v1666
        %v1668 = vpop.f32.mrb[0].mxu0
        %v1669 = vadd.f32 %v1592, %v1668
        %v1670 = vpop.f32.mrb[0].mxu0
        %1671 = vdwg.mxu0
        %1672 = vmatprep.subr.mxu0 0.0
        %v1673 = vand.u32 %v1335, 4294901760
        %v1674 = vsub.f32 %v1335, %v1673
        %v1675 = vand.u32 %v1674, 4294901760
        %1676 = vmatpush1.msra.mxu0 %v1675
        %1677 = vmatprep.subr.mxu0 0.0
        %v1678 = vand.u32 %v1336, 4294901760
        %v1679 = vsub.f32 %v1336, %v1678
        %v1680 = vand.u32 %v1679, 4294901760
        %1681 = vmatpush1.msra.mxu0 %v1680
        %1682 = vmatprep.subr.mxu0 0.0
        %v1683 = vand.u32 %v1337, 4294901760
        %v1684 = vsub.f32 %v1337, %v1683
        %v1685 = vand.u32 %v1684, 4294901760
        %1686 = vmatpush1.msra.mxu0 %v1685
        %1687 = vmatprep.subr.mxu0 0.0
        %v1688 = vand.u32 %v1338, 4294901760
        %v1689 = vsub.f32 %v1338, %v1688
        %v1690 = vand.u32 %v1689, 4294901760
        %1691 = vmatpush1.msra.mxu0 %v1690
        %1692 = vmatprep.subr.mxu0 0.0
        %1693 = vmatpush1.msra.mxu0 0.0
        %1694 = vmatprep.subr.mxu0 0.0
        %1695 = vmatpush1.msra.mxu0 0.0
        %1696 = vmatprep.subr.mxu0 0.0
        %1697 = vmatpush1.msra.mxu0 0.0
        %1698 = vmatprep.subr.mxu0 0.0
        %1699 = vmatpush1.msra.mxu0 0.0
        %1700 = vmatprep.subr.mxu0 0.0
        %1701 = vmatpush1.msra.mxu0 0.0
        %1702 = vmatprep.subr.mxu0 0.0
        %1703 = vmatpush1.msra.mxu0 0.0
        %1704 = vmatprep.subr.mxu0 0.0
        %1705 = vmatpush1.msra.mxu0 0.0
        %1706 = vmatprep.subr.mxu0 0.0
        %1707 = vmatpush1.msra.mxu0 0.0
        %1708 = vmatprep.subr.mxu0 0.0
        %1709 = vmatpush1.msra.mxu0 0.0
        %1710 = vmatprep.subr.mxu0 0.0
        %1711 = vmatpush1.msra.mxu0 0.0
        %1712 = vmatprep.subr.mxu0 0.0
        %1713 = vmatpush1.msra.mxu0 0.0
        %1714 = vmatprep.subr.mxu0 0.0
        %1715 = vmatpush1.msra.mxu0 0.0
        %1716 = vmatprep.subr.mxu0 0.0
        %1717 = vmatpush1.msra.mxu0 0.0
        %1718 = vmatprep.subr.mxu0 0.0
        %1719 = vmatpush1.msra.mxu0 0.0
        %1720 = vmatprep.subr.mxu0 0.0
        %1721 = vmatpush1.msra.mxu0 0.0
        %1722 = vmatprep.subr.mxu0 0.0
        %1723 = vmatpush1.msra.mxu0 0.0
        %1724 = vmatprep.subr.mxu0 0.0
        %1725 = vmatpush1.msra.mxu0 0.0
        %1726 = vmatprep.subr.mxu0 0.0
        %1727 = vmatpush1.msra.mxu0 0.0
        %1728 = vmatprep.subr.mxu0 0.0
        %1729 = vmatpush1.msra.mxu0 0.0
        %1730 = vmatprep.subr.mxu0 0.0
        %1731 = vmatpush1.msra.mxu0 0.0
        %1732 = vmatprep.subr.mxu0 0.0
        %1733 = vmatpush1.msra.mxu0 0.0
        %1734 = vmatprep.subr.mxu0 0.0
        %1735 = vmatpush1.msra.mxu0 0.0
        %1736 = vmatprep.subr.mxu0 0.0
        %1737 = vmatpush1.msra.mxu0 0.0
        %1738 = vmatprep.subr.mxu0 0.0
        %1739 = vmatpush1.msra.mxu0 0.0
        %1740 = vmatprep.subr.mxu0 0.0
        %1741 = vmatpush1.msra.mxu0 0.0
        %1742 = vmatprep.subr.mxu0 0.0
        %1743 = vmatpush1.msra.mxu0 0.0
        %1744 = vmatprep.subr.mxu0 0.0
        %1745 = vmatpush1.msra.mxu0 0.0
        %1746 = vmatprep.subr.mxu0 0.0
        %1747 = vmatpush1.msra.mxu0 0.0
        %1748 = vmatprep.mubr.f32.mxu0 0.0
        %v1749 = vand.u32 %v1343, 4294901760
        %1750 = vmatmul.mubr.f32.gmra.mrb[0].mxu0 %v1749
        %v1751 = vpop.f32.mrb[0].mxu0
        %v1752 = vadd.f32 %v1669, %v1751
        %v1753 = vpop.f32.mrb[0].mxu0
        %1754 = vdwg.mxu0
        %1755 = vmatprep.subr.mxu0 0.0
        %v1756 = vand.u32 %v1335, 4294901760
        %1757 = vmatpush1.msra.mxu0 %v1756
        %1758 = vmatprep.subr.mxu0 0.0
        %v1759 = vand.u32 %v1336, 4294901760
        %1760 = vmatpush1.msra.mxu0 %v1759
        %1761 = vmatprep.subr.mxu0 0.0
        %v1762 = vand.u32 %v1337, 4294901760
        %1763 = vmatpush1.msra.mxu0 %v1762
        %1764 = vmatprep.subr.mxu0 0.0
        %v1765 = vand.u32 %v1338, 4294901760
        %1766 = vmatpush1.msra.mxu0 %v1765
        %1767 = vmatprep.subr.mxu0 0.0
        %1768 = vmatpush1.msra.mxu0 0.0
        %1769 = vmatprep.subr.mxu0 0.0
        %1770 = vmatpush1.msra.mxu0 0.0
        %1771 = vmatprep.subr.mxu0 0.0
        %1772 = vmatpush1.msra.mxu0 0.0
        %1773 = vmatprep.subr.mxu0 0.0
        %1774 = vmatpush1.msra.mxu0 0.0
        %1775 = vmatprep.subr.mxu0 0.0
        %1776 = vmatpush1.msra.mxu0 0.0
        %1777 = vmatprep.subr.mxu0 0.0
        %1778 = vmatpush1.msra.mxu0 0.0
        %1779 = vmatprep.subr.mxu0 0.0
        %1780 = vmatpush1.msra.mxu0 0.0
        %1781 = vmatprep.subr.mxu0 0.0
        %1782 = vmatpush1.msra.mxu0 0.0
        %1783 = vmatprep.subr.mxu0 0.0
        %1784 = vmatpush1.msra.mxu0 0.0
        %1785 = vmatprep.subr.mxu0 0.0
        %1786 = vmatpush1.msra.mxu0 0.0
        %1787 = vmatprep.subr.mxu0 0.0
        %1788 = vmatpush1.msra.mxu0 0.0
        %1789 = vmatprep.subr.mxu0 0.0
        %1790 = vmatpush1.msra.mxu0 0.0
        %1791 = vmatprep.subr.mxu0 0.0
        %1792 = vmatpush1.msra.mxu0 0.0
        %1793 = vmatprep.subr.mxu0 0.0
        %1794 = vmatpush1.msra.mxu0 0.0
        %1795 = vmatprep.subr.mxu0 0.0
        %1796 = vmatpush1.msra.mxu0 0.0
        %1797 = vmatprep.subr.mxu0 0.0
        %1798 = vmatpush1.msra.mxu0 0.0
        %1799 = vmatprep.subr.mxu0 0.0
        %1800 = vmatpush1.msra.mxu0 0.0
        %1801 = vmatprep.subr.mxu0 0.0
        %1802 = vmatpush1.msra.mxu0 0.0
        %1803 = vmatprep.subr.mxu0 0.0
        %1804 = vmatpush1.msra.mxu0 0.0
        %1805 = vmatprep.subr.mxu0 0.0
        %1806 = vmatpush1.msra.mxu0 0.0
        %1807 = vmatprep.subr.mxu0 0.0
        %1808 = vmatpush1.msra.mxu0 0.0
        %1809 = vmatprep.subr.mxu0 0.0
        %1810 = vmatpush1.msra.mxu0 0.0
        %1811 = vmatprep.subr.mxu0 0.0
        %1812 = vmatpush1.msra.mxu0 0.0
        %1813 = vmatprep.subr.mxu0 0.0
        %1814 = vmatpush1.msra.mxu0 0.0
        %1815 = vmatprep.subr.mxu0 0.0
        %1816 = vmatpush1.msra.mxu0 0.0
        %1817 = vmatprep.subr.mxu0 0.0
        %1818 = vmatpush1.msra.mxu0 0.0
        %1819 = vmatprep.subr.mxu0 0.0
        %1820 = vmatpush1.msra.mxu0 0.0
        %1821 = vmatprep.subr.mxu0 0.0
        %1822 = vmatpush1.msra.mxu0 0.0
        %1823 = vmatprep.mubr.f32.mxu0 0.0
        %v1824 = vand.u32 %v1343, 4294901760
        %1825 = vmatmul.mubr.f32.gmra.mrb[0].mxu0 %v1824
        %v1826 = vpop.f32.mrb[0].mxu0
        %v1827 = vadd.f32 %v1752, %v1826
        %v1828 = vpop.f32.mrb[0].mxu0
        %1829 = vdwg.mxu0
        %vm1830 = vcmp.gt.f32.partialorder %v1827, 0.0
        %v1831 = vmin.f32 %v1827, 0.0
        %v1832 = vmul.f32 %v1831, 1.442695
        %v1833 = vpow.pop %v1832
        %v1834 = vsub.f32 %v1833, 1.0
        %v1835 = vsel %vm1830, %v1827, %v1834
        %v1836 = vld [vmem:[#allocation11] sm:$0xff]
        %v1837 = vld [vmem:[#allocation11 + $0x8] sm:$0xff]
        %v1838 = vld [vmem:[#allocation11 + $0x10] sm:$0xff]
        %v1839 = vld [vmem:[#allocation11 + $0x18] sm:$0xff]
        %v1840 = vld [vmem:[#allocation11 + $0x20] sm:$0xff]
        %v1841 = vld [vmem:[#allocation11 + $0x28] sm:$0xff]
        %v1842 = vld [vmem:[#allocation11 + $0x30] sm:$0xff]
        %v1843 = vld [vmem:[#allocation11 + $0x38] sm:$0xff]
        %v1845 = vlaneseq
        %v1846 = vshrl.u32 %v1845, 7
        %v1847 = vsub.s32 0, %v1846
        %v1848 = vrot.slane %v354, %v1847
        %vm1850 = vcmask 523264
        %v1852 = vsel %vm1850, %v1835, 0
        %1854 = vmatprep.subr.mxu0 0.0
        %v1855 = vand.u32 %v1836, 4294901760
        %1856 = vmatpush1.msra.mxu0 %v1855
        %1857 = vmatprep.subr.mxu0 0.0
        %v1858 = vand.u32 %v1837, 4294901760
        %1859 = vmatpush1.msra.mxu0 %v1858
        %1860 = vmatprep.subr.mxu0 0.0
        %v1861 = vand.u32 %v1838, 4294901760
        %1862 = vmatpush1.msra.mxu0 %v1861
        %1863 = vmatprep.subr.mxu0 0.0
        %v1864 = vand.u32 %v1839, 4294901760
        %1865 = vmatpush1.msra.mxu0 %v1864
        %1866 = vmatprep.subr.mxu0 0.0
        %v1867 = vand.u32 %v1840, 4294901760
        %1868 = vmatpush1.msra.mxu0 %v1867
        %1869 = vmatprep.subr.mxu0 0.0
        %v1870 = vand.u32 %v1841, 4294901760
        %1871 = vmatpush1.msra.mxu0 %v1870
        %1872 = vmatprep.subr.mxu0 0.0
        %v1873 = vand.u32 %v1842, 4294901760
        %1874 = vmatpush1.msra.mxu0 %v1873
        %1875 = vmatprep.subr.mxu0 0.0
        %v1876 = vand.u32 %v1843, 4294901760
        %1877 = vmatpush1.msra.mxu0 %v1876
        %1878 = vmatprep.subr.mxu0 0.0
        %1879 = vmatpush1.msra.mxu0 0.0
        %1880 = vmatprep.subr.mxu0 0.0
        %1881 = vmatpush1.msra.mxu0 0.0
        %1882 = vmatprep.subr.mxu0 0.0
        %1883 = vmatpush1.msra.mxu0 0.0
        %1884 = vmatprep.subr.mxu0 0.0
        %1885 = vmatpush1.msra.mxu0 0.0
        %1886 = vmatprep.subr.mxu0 0.0
        %1887 = vmatpush1.msra.mxu0 0.0
        %1888 = vmatprep.subr.mxu0 0.0
        %1889 = vmatpush1.msra.mxu0 0.0
        %1890 = vmatprep.subr.mxu0 0.0
        %1891 = vmatpush1.msra.mxu0 0.0
        %1892 = vmatprep.subr.mxu0 0.0
        %1893 = vmatpush1.msra.mxu0 0.0
        %1894 = vmatprep.subr.mxu0 0.0
        %1895 = vmatpush1.msra.mxu0 0.0
        %1896 = vmatprep.subr.mxu0 0.0
        %1897 = vmatpush1.msra.mxu0 0.0
        %1898 = vmatprep.subr.mxu0 0.0
        %1899 = vmatpush1.msra.mxu0 0.0
        %1900 = vmatprep.subr.mxu0 0.0
        %1901 = vmatpush1.msra.mxu0 0.0
        %1902 = vmatprep.subr.mxu0 0.0
        %1903 = vmatpush1.msra.mxu0 0.0
        %1904 = vmatprep.subr.mxu0 0.0
        %1905 = vmatpush1.msra.mxu0 0.0
        %1906 = vmatprep.subr.mxu0 0.0
        %1907 = vmatpush1.msra.mxu0 0.0
        %1908 = vmatprep.subr.mxu0 0.0
        %1909 = vmatpush1.msra.mxu0 0.0
        %1910 = vmatprep.subr.mxu0 0.0
        %1911 = vmatpush1.msra.mxu0 0.0
        %1912 = vmatprep.subr.mxu0 0.0
        %1913 = vmatpush1.msra.mxu0 0.0
        %1914 = vmatprep.subr.mxu0 0.0
        %1915 = vmatpush1.msra.mxu0 0.0
        %1916 = vmatprep.subr.mxu0 0.0
        %1917 = vmatpush1.msra.mxu0 0.0
        %1918 = vmatprep.subr.mxu0 0.0
        %1919 = vmatpush1.msra.mxu0 0.0
        %1920 = vmatprep.subr.mxu0 0.0
        %1921 = vmatpush1.msra.mxu0 0.0
        %1922 = vmatprep.subr.mxu0 0.0
        %1923 = vmatpush1.msra.mxu0 0.0
        %1924 = vmatprep.subr.mxu0 0.0
        %1925 = vmatpush1.msra.mxu0 0.0
        %1926 = vmatprep.mubr.f32.mxu0 0.0
        %v1927 = vand.u32 %v1852, 4294901760
        %v1928 = vsub.f32 %v1852, %v1927
        %v1929 = vand.u32 %v1928, 4294901760
        %v1930 = vsub.f32 %v1928, %v1929
        %v1931 = vand.u32 %v1930, 4294901760
        %1932 = vmatmul.mubr.f32.gmra.mrb[0].mxu0 %v1931
        %v1933 = vpop.f32.mrb[0].mxu0
        %v1934 = vadd.f32 %v1848, %v1933
        %v1935 = vpop.f32.mrb[0].mxu0
        %1936 = vdwg.mxu0
        %1937 = vmatprep.subr.mxu0 0.0
        %v1938 = vand.u32 %v1836, 4294901760
        %v1939 = vsub.f32 %v1836, %v1938
        %v1940 = vand.u32 %v1939, 4294901760
        %v1941 = vsub.f32 %v1939, %v1940
        %v1942 = vand.u32 %v1941, 4294901760
        %1943 = vmatpush1.msra.mxu0 %v1942
        %1944 = vmatprep.subr.mxu0 0.0
        %v1945 = vand.u32 %v1837, 4294901760
        %v1946 = vsub.f32 %v1837, %v1945
        %v1947 = vand.u32 %v1946, 4294901760
        %v1948 = vsub.f32 %v1946, %v1947
        %v1949 = vand.u32 %v1948, 4294901760
        %1950 = vmatpush1.msra.mxu0 %v1949
        %1951 = vmatprep.subr.mxu0 0.0
        %v1952 = vand.u32 %v1838, 4294901760
        %v1953 = vsub.f32 %v1838, %v1952
        %v1954 = vand.u32 %v1953, 4294901760
        %v1955 = vsub.f32 %v1953, %v1954
        %v1956 = vand.u32 %v1955, 4294901760
        %1957 = vmatpush1.msra.mxu0 %v1956
        %1958 = vmatprep.subr.mxu0 0.0
        %v1959 = vand.u32 %v1839, 4294901760
        %v1960 = vsub.f32 %v1839, %v1959
        %v1961 = vand.u32 %v1960, 4294901760
        %v1962 = vsub.f32 %v1960, %v1961
        %v1963 = vand.u32 %v1962, 4294901760
        %1964 = vmatpush1.msra.mxu0 %v1963
        %1965 = vmatprep.subr.mxu0 0.0
        %v1966 = vand.u32 %v1840, 4294901760
        %v1967 = vsub.f32 %v1840, %v1966
        %v1968 = vand.u32 %v1967, 4294901760
        %v1969 = vsub.f32 %v1967, %v1968
        %v1970 = vand.u32 %v1969, 4294901760
        %1971 = vmatpush1.msra.mxu0 %v1970
        %1972 = vmatprep.subr.mxu0 0.0
        %v1973 = vand.u32 %v1841, 4294901760
        %v1974 = vsub.f32 %v1841, %v1973
        %v1975 = vand.u32 %v1974, 4294901760
        %v1976 = vsub.f32 %v1974, %v1975
        %v1977 = vand.u32 %v1976, 4294901760
        %1978 = vmatpush1.msra.mxu0 %v1977
        %1979 = vmatprep.subr.mxu0 0.0
        %v1980 = vand.u32 %v1842, 4294901760
        %v1981 = vsub.f32 %v1842, %v1980
        %v1982 = vand.u32 %v1981, 4294901760
        %v1983 = vsub.f32 %v1981, %v1982
        %v1984 = vand.u32 %v1983, 4294901760
        %1985 = vmatpush1.msra.mxu0 %v1984
        %1986 = vmatprep.subr.mxu0 0.0
        %v1987 = vand.u32 %v1843, 4294901760
        %v1988 = vsub.f32 %v1843, %v1987
        %v1989 = vand.u32 %v1988, 4294901760
        %v1990 = vsub.f32 %v1988, %v1989
        %v1991 = vand.u32 %v1990, 4294901760
        %1992 = vmatpush1.msra.mxu0 %v1991
        %1993 = vmatprep.subr.mxu0 0.0
        %1994 = vmatpush1.msra.mxu0 0.0
        %1995 = vmatprep.subr.mxu0 0.0
        %1996 = vmatpush1.msra.mxu0 0.0
        %1997 = vmatprep.subr.mxu0 0.0
        %1998 = vmatpush1.msra.mxu0 0.0
        %1999 = vmatprep.subr.mxu0 0.0
        %2000 = vmatpush1.msra.mxu0 0.0
        %2001 = vmatprep.subr.mxu0 0.0
        %2002 = vmatpush1.msra.mxu0 0.0
        %2003 = vmatprep.subr.mxu0 0.0
        %2004 = vmatpush1.msra.mxu0 0.0
        %2005 = vmatprep.subr.mxu0 0.0
        %2006 = vmatpush1.msra.mxu0 0.0
        %2007 = vmatprep.subr.mxu0 0.0
        %2008 = vmatpush1.msra.mxu0 0.0
        %2009 = vmatprep.subr.mxu0 0.0
        %2010 = vmatpush1.msra.mxu0 0.0
        %2011 = vmatprep.subr.mxu0 0.0
        %2012 = vmatpush1.msra.mxu0 0.0
        %2013 = vmatprep.subr.mxu0 0.0
        %2014 = vmatpush1.msra.mxu0 0.0
        %2015 = vmatprep.subr.mxu0 0.0
        %2016 = vmatpush1.msra.mxu0 0.0
        %2017 = vmatprep.subr.mxu0 0.0
        %2018 = vmatpush1.msra.mxu0 0.0
        %2019 = vmatprep.subr.mxu0 0.0
        %2020 = vmatpush1.msra.mxu0 0.0
        %2021 = vmatprep.subr.mxu0 0.0
        %2022 = vmatpush1.msra.mxu0 0.0
        %2023 = vmatprep.subr.mxu0 0.0
        %2024 = vmatpush1.msra.mxu0 0.0
        %2025 = vmatprep.subr.mxu0 0.0
        %2026 = vmatpush1.msra.mxu0 0.0
        %2027 = vmatprep.subr.mxu0 0.0
        %2028 = vmatpush1.msra.mxu0 0.0
        %2029 = vmatprep.subr.mxu0 0.0
        %2030 = vmatpush1.msra.mxu0 0.0
        %2031 = vmatprep.subr.mxu0 0.0
        %2032 = vmatpush1.msra.mxu0 0.0
        %2033 = vmatprep.subr.mxu0 0.0
        %2034 = vmatpush1.msra.mxu0 0.0
        %2035 = vmatprep.subr.mxu0 0.0
        %2036 = vmatpush1.msra.mxu0 0.0
        %2037 = vmatprep.subr.mxu0 0.0
        %2038 = vmatpush1.msra.mxu0 0.0
        %2039 = vmatprep.subr.mxu0 0.0
        %2040 = vmatpush1.msra.mxu0 0.0
        %2041 = vmatprep.mubr.f32.mxu0 0.0
        %v2042 = vand.u32 %v1852, 4294901760
        %2043 = vmatmul.mubr.f32.gmra.mrb[0].mxu0 %v2042
        %v2044 = vpop.f32.mrb[0].mxu0
        %v2045 = vadd.f32 %v1934, %v2044
        %v2046 = vpop.f32.mrb[0].mxu0
        %2047 = vdwg.mxu0
        %2048 = vmatprep.subr.mxu0 0.0
        %v2049 = vand.u32 %v1836, 4294901760
        %v2050 = vsub.f32 %v1836, %v2049
        %2051 = vmatpush1.msra.mxu0 %v2050
        %2052 = vmatprep.subr.mxu0 0.0
        %v2053 = vand.u32 %v1837, 4294901760
        %v2054 = vsub.f32 %v1837, %v2053
        %2055 = vmatpush1.msra.mxu0 %v2054
        %2056 = vmatprep.subr.mxu0 0.0
        %v2057 = vand.u32 %v1838, 4294901760
        %v2058 = vsub.f32 %v1838, %v2057
        %2059 = vmatpush1.msra.mxu0 %v2058
        %2060 = vmatprep.subr.mxu0 0.0
        %v2061 = vand.u32 %v1839, 4294901760
        %v2062 = vsub.f32 %v1839, %v2061
        %2063 = vmatpush1.msra.mxu0 %v2062
        %2064 = vmatprep.subr.mxu0 0.0
        %v2065 = vand.u32 %v1840, 4294901760
        %v2066 = vsub.f32 %v1840, %v2065
        %2067 = vmatpush1.msra.mxu0 %v2066
        %2068 = vmatprep.subr.mxu0 0.0
        %v2069 = vand.u32 %v1841, 4294901760
        %v2070 = vsub.f32 %v1841, %v2069
        %2071 = vmatpush1.msra.mxu0 %v2070
        %2072 = vmatprep.subr.mxu0 0.0
        %v2073 = vand.u32 %v1842, 4294901760
        %v2074 = vsub.f32 %v1842, %v2073
        %2075 = vmatpush1.msra.mxu0 %v2074
        %2076 = vmatprep.subr.mxu0 0.0
        %v2077 = vand.u32 %v1843, 4294901760
        %v2078 = vsub.f32 %v1843, %v2077
        %2079 = vmatpush1.msra.mxu0 %v2078
        %2080 = vmatprep.subr.mxu0 0.0
        %2081 = vmatpush1.msra.mxu0 0.0
        %2082 = vmatprep.subr.mxu0 0.0
        %2083 = vmatpush1.msra.mxu0 0.0
        %2084 = vmatprep.subr.mxu0 0.0
        %2085 = vmatpush1.msra.mxu0 0.0
        %2086 = vmatprep.subr.mxu0 0.0
        %2087 = vmatpush1.msra.mxu0 0.0
        %2088 = vmatprep.subr.mxu0 0.0
        %2089 = vmatpush1.msra.mxu0 0.0
        %2090 = vmatprep.subr.mxu0 0.0
        %2091 = vmatpush1.msra.mxu0 0.0
        %2092 = vmatprep.subr.mxu0 0.0
        %2093 = vmatpush1.msra.mxu0 0.0
        %2094 = vmatprep.subr.mxu0 0.0
        %2095 = vmatpush1.msra.mxu0 0.0
        %2096 = vmatprep.subr.mxu0 0.0
        %2097 = vmatpush1.msra.mxu0 0.0
        %2098 = vmatprep.subr.mxu0 0.0
        %2099 = vmatpush1.msra.mxu0 0.0
        %2100 = vmatprep.subr.mxu0 0.0
        %2101 = vmatpush1.msra.mxu0 0.0
        %2102 = vmatprep.subr.mxu0 0.0
        %2103 = vmatpush1.msra.mxu0 0.0
        %2104 = vmatprep.subr.mxu0 0.0
        %2105 = vmatpush1.msra.mxu0 0.0
        %2106 = vmatprep.subr.mxu0 0.0
        %2107 = vmatpush1.msra.mxu0 0.0
        %2108 = vmatprep.subr.mxu0 0.0
        %2109 = vmatpush1.msra.mxu0 0.0
        %2110 = vmatprep.subr.mxu0 0.0
        %2111 = vmatpush1.msra.mxu0 0.0
        %2112 = vmatprep.subr.mxu0 0.0
        %2113 = vmatpush1.msra.mxu0 0.0
        %2114 = vmatprep.subr.mxu0 0.0
        %2115 = vmatpush1.msra.mxu0 0.0
        %2116 = vmatprep.subr.mxu0 0.0
        %2117 = vmatpush1.msra.mxu0 0.0
        %2118 = vmatprep.subr.mxu0 0.0
        %2119 = vmatpush1.msra.mxu0 0.0
        %2120 = vmatprep.subr.mxu0 0.0
        %2121 = vmatpush1.msra.mxu0 0.0
        %2122 = vmatprep.subr.mxu0 0.0
        %2123 = vmatpush1.msra.mxu0 0.0
        %2124 = vmatprep.subr.mxu0 0.0
        %2125 = vmatpush1.msra.mxu0 0.0
        %2126 = vmatprep.subr.mxu0 0.0
        %2127 = vmatpush1.msra.mxu0 0.0
        %2128 = vmatprep.mubr.f32.mxu0 0.0
        %v2129 = vand.u32 %v1852, 4294901760
        %v2130 = vsub.f32 %v1852, %v2129
        %2131 = vmatmul.mubr.f32.gmra.mrb[0].mxu0 %v2130
        %v2132 = vpop.f32.mrb[0].mxu0
        %v2133 = vadd.f32 %v2045, %v2132
        %v2134 = vpop.f32.mrb[0].mxu0
        %2135 = vdwg.mxu0
        %2136 = vmatprep.subr.mxu0 0.0
        %v2137 = vand.u32 %v1836, 4294901760
        %2138 = vmatpush1.msra.mxu0 %v2137
        %2139 = vmatprep.subr.mxu0 0.0
        %v2140 = vand.u32 %v1837, 4294901760
        %2141 = vmatpush1.msra.mxu0 %v2140
        %2142 = vmatprep.subr.mxu0 0.0
        %v2143 = vand.u32 %v1838, 4294901760
        %2144 = vmatpush1.msra.mxu0 %v2143
        %2145 = vmatprep.subr.mxu0 0.0
        %v2146 = vand.u32 %v1839, 4294901760
        %2147 = vmatpush1.msra.mxu0 %v2146
        %2148 = vmatprep.subr.mxu0 0.0
        %v2149 = vand.u32 %v1840, 4294901760
        %2150 = vmatpush1.msra.mxu0 %v2149
        %2151 = vmatprep.subr.mxu0 0.0
        %v2152 = vand.u32 %v1841, 4294901760
        %2153 = vmatpush1.msra.mxu0 %v2152
        %2154 = vmatprep.subr.mxu0 0.0
        %v2155 = vand.u32 %v1842, 4294901760
        %2156 = vmatpush1.msra.mxu0 %v2155
        %2157 = vmatprep.subr.mxu0 0.0
        %v2158 = vand.u32 %v1843, 4294901760
        %2159 = vmatpush1.msra.mxu0 %v2158
        %2160 = vmatprep.subr.mxu0 0.0
        %2161 = vmatpush1.msra.mxu0 0.0
        %2162 = vmatprep.subr.mxu0 0.0
        %2163 = vmatpush1.msra.mxu0 0.0
        %2164 = vmatprep.subr.mxu0 0.0
        %2165 = vmatpush1.msra.mxu0 0.0
        %2166 = vmatprep.subr.mxu0 0.0
        %2167 = vmatpush1.msra.mxu0 0.0
        %2168 = vmatprep.subr.mxu0 0.0
        %2169 = vmatpush1.msra.mxu0 0.0
        %2170 = vmatprep.subr.mxu0 0.0
        %2171 = vmatpush1.msra.mxu0 0.0
        %2172 = vmatprep.subr.mxu0 0.0
        %2173 = vmatpush1.msra.mxu0 0.0
        %2174 = vmatprep.subr.mxu0 0.0
        %2175 = vmatpush1.msra.mxu0 0.0
        %2176 = vmatprep.subr.mxu0 0.0
        %2177 = vmatpush1.msra.mxu0 0.0
        %2178 = vmatprep.subr.mxu0 0.0
        %2179 = vmatpush1.msra.mxu0 0.0
        %2180 = vmatprep.subr.mxu0 0.0
        %2181 = vmatpush1.msra.mxu0 0.0
        %2182 = vmatprep.subr.mxu0 0.0
        %2183 = vmatpush1.msra.mxu0 0.0
        %2184 = vmatprep.subr.mxu0 0.0
        %2185 = vmatpush1.msra.mxu0 0.0
        %2186 = vmatprep.subr.mxu0 0.0
        %2187 = vmatpush1.msra.mxu0 0.0
        %2188 = vmatprep.subr.mxu0 0.0
        %2189 = vmatpush1.msra.mxu0 0.0
        %2190 = vmatprep.subr.mxu0 0.0
        %2191 = vmatpush1.msra.mxu0 0.0
        %2192 = vmatprep.subr.mxu0 0.0
        %2193 = vmatpush1.msra.mxu0 0.0
        %2194 = vmatprep.subr.mxu0 0.0
        %2195 = vmatpush1.msra.mxu0 0.0
        %2196 = vmatprep.subr.mxu0 0.0
        %2197 = vmatpush1.msra.mxu0 0.0
        %2198 = vmatprep.subr.mxu0 0.0
        %2199 = vmatpush1.msra.mxu0 0.0
        %2200 = vmatprep.subr.mxu0 0.0
        %2201 = vmatpush1.msra.mxu0 0.0
        %2202 = vmatprep.subr.mxu0 0.0
        %2203 = vmatpush1.msra.mxu0 0.0
        %2204 = vmatprep.subr.mxu0 0.0
        %2205 = vmatpush1.msra.mxu0 0.0
        %2206 = vmatprep.subr.mxu0 0.0
        %2207 = vmatpush1.msra.mxu0 0.0
        %2208 = vmatprep.mubr.f32.mxu0 0.0
        %v2209 = vand.u32 %v1852, 4294901760
        %v2210 = vsub.f32 %v1852, %v2209
        %v2211 = vand.u32 %v2210, 4294901760
        %2212 = vmatmul.mubr.f32.gmra.mrb[0].mxu0 %v2211
        %v2213 = vpop.f32.mrb[0].mxu0
        %v2214 = vadd.f32 %v2133, %v2213
        %v2215 = vpop.f32.mrb[0].mxu0
        %2216 = vdwg.mxu0
        %2217 = vmatprep.subr.mxu0 0.0
        %v2218 = vand.u32 %v1836, 4294901760
        %v2219 = vsub.f32 %v1836, %v2218
        %v2220 = vand.u32 %v2219, 4294901760
        %2221 = vmatpush1.msra.mxu0 %v2220
        %2222 = vmatprep.subr.mxu0 0.0
        %v2223 = vand.u32 %v1837, 4294901760
        %v2224 = vsub.f32 %v1837, %v2223
        %v2225 = vand.u32 %v2224, 4294901760
        %2226 = vmatpush1.msra.mxu0 %v2225
        %2227 = vmatprep.subr.mxu0 0.0
        %v2228 = vand.u32 %v1838, 4294901760
        %v2229 = vsub.f32 %v1838, %v2228
        %v2230 = vand.u32 %v2229, 4294901760
        %2231 = vmatpush1.msra.mxu0 %v2230
        %2232 = vmatprep.subr.mxu0 0.0
        %v2233 = vand.u32 %v1839, 4294901760
        %v2234 = vsub.f32 %v1839, %v2233
        %v2235 = vand.u32 %v2234, 4294901760
        %2236 = vmatpush1.msra.mxu0 %v2235
        %2237 = vmatprep.subr.mxu0 0.0
        %v2238 = vand.u32 %v1840, 4294901760
        %v2239 = vsub.f32 %v1840, %v2238
        %v2240 = vand.u32 %v2239, 4294901760
        %2241 = vmatpush1.msra.mxu0 %v2240
        %2242 = vmatprep.subr.mxu0 0.0
        %v2243 = vand.u32 %v1841, 4294901760
        %v2244 = vsub.f32 %v1841, %v2243
        %v2245 = vand.u32 %v2244, 4294901760
        %2246 = vmatpush1.msra.mxu0 %v2245
        %2247 = vmatprep.subr.mxu0 0.0
        %v2248 = vand.u32 %v1842, 4294901760
        %v2249 = vsub.f32 %v1842, %v2248
        %v2250 = vand.u32 %v2249, 4294901760
        %2251 = vmatpush1.msra.mxu0 %v2250
        %2252 = vmatprep.subr.mxu0 0.0
        %v2253 = vand.u32 %v1843, 4294901760
        %v2254 = vsub.f32 %v1843, %v2253
        %v2255 = vand.u32 %v2254, 4294901760
        %2256 = vmatpush1.msra.mxu0 %v2255
        %2257 = vmatprep.subr.mxu0 0.0
        %2258 = vmatpush1.msra.mxu0 0.0
        %2259 = vmatprep.subr.mxu0 0.0
        %2260 = vmatpush1.msra.mxu0 0.0
        %2261 = vmatprep.subr.mxu0 0.0
        %2262 = vmatpush1.msra.mxu0 0.0
        %2263 = vmatprep.subr.mxu0 0.0
        %2264 = vmatpush1.msra.mxu0 0.0
        %2265 = vmatprep.subr.mxu0 0.0
        %2266 = vmatpush1.msra.mxu0 0.0
        %2267 = vmatprep.subr.mxu0 0.0
        %2268 = vmatpush1.msra.mxu0 0.0
        %2269 = vmatprep.subr.mxu0 0.0
        %2270 = vmatpush1.msra.mxu0 0.0
        %2271 = vmatprep.subr.mxu0 0.0
        %2272 = vmatpush1.msra.mxu0 0.0
        %2273 = vmatprep.subr.mxu0 0.0
        %2274 = vmatpush1.msra.mxu0 0.0
        %2275 = vmatprep.subr.mxu0 0.0
        %2276 = vmatpush1.msra.mxu0 0.0
        %2277 = vmatprep.subr.mxu0 0.0
        %2278 = vmatpush1.msra.mxu0 0.0
        %2279 = vmatprep.subr.mxu0 0.0
        %2280 = vmatpush1.msra.mxu0 0.0
        %2281 = vmatprep.subr.mxu0 0.0
        %2282 = vmatpush1.msra.mxu0 0.0
        %2283 = vmatprep.subr.mxu0 0.0
        %2284 = vmatpush1.msra.mxu0 0.0
        %2285 = vmatprep.subr.mxu0 0.0
        %2286 = vmatpush1.msra.mxu0 0.0
        %2287 = vmatprep.subr.mxu0 0.0
        %2288 = vmatpush1.msra.mxu0 0.0
        %2289 = vmatprep.subr.mxu0 0.0
        %2290 = vmatpush1.msra.mxu0 0.0
        %2291 = vmatprep.subr.mxu0 0.0
        %2292 = vmatpush1.msra.mxu0 0.0
        %2293 = vmatprep.subr.mxu0 0.0
        %2294 = vmatpush1.msra.mxu0 0.0
        %2295 = vmatprep.subr.mxu0 0.0
        %2296 = vmatpush1.msra.mxu0 0.0
        %2297 = vmatprep.subr.mxu0 0.0
        %2298 = vmatpush1.msra.mxu0 0.0
        %2299 = vmatprep.subr.mxu0 0.0
        %2300 = vmatpush1.msra.mxu0 0.0
        %2301 = vmatprep.subr.mxu0 0.0
        %2302 = vmatpush1.msra.mxu0 0.0
        %2303 = vmatprep.subr.mxu0 0.0
        %2304 = vmatpush1.msra.mxu0 0.0
        %2305 = vmatprep.mubr.f32.mxu0 0.0
        %v2306 = vand.u32 %v1852, 4294901760
        %2307 = vmatmul.mubr.f32.gmra.mrb[0].mxu0 %v2306
        %v2308 = vpop.f32.mrb[0].mxu0
        %v2309 = vadd.f32 %v2214, %v2308
        %v2310 = vpop.f32.mrb[0].mxu0
        %2311 = vdwg.mxu0
        %2312 = vmatprep.subr.mxu0 0.0
        %v2313 = vand.u32 %v1836, 4294901760
        %2314 = vmatpush1.msra.mxu0 %v2313
        %2315 = vmatprep.subr.mxu0 0.0
        %v2316 = vand.u32 %v1837, 4294901760
        %2317 = vmatpush1.msra.mxu0 %v2316
        %2318 = vmatprep.subr.mxu0 0.0
        %v2319 = vand.u32 %v1838, 4294901760
        %2320 = vmatpush1.msra.mxu0 %v2319
        %2321 = vmatprep.subr.mxu0 0.0
        %v2322 = vand.u32 %v1839, 4294901760
        %2323 = vmatpush1.msra.mxu0 %v2322
        %2324 = vmatprep.subr.mxu0 0.0
        %v2325 = vand.u32 %v1840, 4294901760
        %2326 = vmatpush1.msra.mxu0 %v2325
        %2327 = vmatprep.subr.mxu0 0.0
        %v2328 = vand.u32 %v1841, 4294901760
        %2329 = vmatpush1.msra.mxu0 %v2328
        %2330 = vmatprep.subr.mxu0 0.0
        %v2331 = vand.u32 %v1842, 4294901760
        %2332 = vmatpush1.msra.mxu0 %v2331
        %2333 = vmatprep.subr.mxu0 0.0
        %v2334 = vand.u32 %v1843, 4294901760
        %2335 = vmatpush1.msra.mxu0 %v2334
        %2336 = vmatprep.subr.mxu0 0.0
        %2337 = vmatpush1.msra.mxu0 0.0
        %2338 = vmatprep.subr.mxu0 0.0
        %2339 = vmatpush1.msra.mxu0 0.0
        %2340 = vmatprep.subr.mxu0 0.0
        %2341 = vmatpush1.msra.mxu0 0.0
        %2342 = vmatprep.subr.mxu0 0.0
        %2343 = vmatpush1.msra.mxu0 0.0
        %2344 = vmatprep.subr.mxu0 0.0
        %2345 = vmatpush1.msra.mxu0 0.0
        %2346 = vmatprep.subr.mxu0 0.0
        %2347 = vmatpush1.msra.mxu0 0.0
        %2348 = vmatprep.subr.mxu0 0.0
        %2349 = vmatpush1.msra.mxu0 0.0
        %2350 = vmatprep.subr.mxu0 0.0
        %2351 = vmatpush1.msra.mxu0 0.0
        %2352 = vmatprep.subr.mxu0 0.0
        %2353 = vmatpush1.msra.mxu0 0.0
        %2354 = vmatprep.subr.mxu0 0.0
        %2355 = vmatpush1.msra.mxu0 0.0
        %2356 = vmatprep.subr.mxu0 0.0
        %2357 = vmatpush1.msra.mxu0 0.0
        %2358 = vmatprep.subr.mxu0 0.0
        %2359 = vmatpush1.msra.mxu0 0.0
        %2360 = vmatprep.subr.mxu0 0.0
        %2361 = vmatpush1.msra.mxu0 0.0
        %2362 = vmatprep.subr.mxu0 0.0
        %2363 = vmatpush1.msra.mxu0 0.0
        %2364 = vmatprep.subr.mxu0 0.0
        %2365 = vmatpush1.msra.mxu0 0.0
        %2366 = vmatprep.subr.mxu0 0.0
        %2367 = vmatpush1.msra.mxu0 0.0
        %2368 = vmatprep.subr.mxu0 0.0
        %2369 = vmatpush1.msra.mxu0 0.0
        %2370 = vmatprep.subr.mxu0 0.0
        %2371 = vmatpush1.msra.mxu0 0.0
        %2372 = vmatprep.subr.mxu0 0.0
        %2373 = vmatpush1.msra.mxu0 0.0
        %2374 = vmatprep.subr.mxu0 0.0
        %2375 = vmatpush1.msra.mxu0 0.0
        %2376 = vmatprep.subr.mxu0 0.0
        %2377 = vmatpush1.msra.mxu0 0.0
        %2378 = vmatprep.subr.mxu0 0.0
        %2379 = vmatpush1.msra.mxu0 0.0
        %2380 = vmatprep.subr.mxu0 0.0
        %2381 = vmatpush1.msra.mxu0 0.0
        %2382 = vmatprep.subr.mxu0 0.0
        %2383 = vmatpush1.msra.mxu0 0.0
        %2384 = vmatprep.mubr.f32.mxu0 0.0
        %v2385 = vand.u32 %v1852, 4294901760
        %2386 = vmatmul.mubr.f32.gmra.mrb[0].mxu0 %v2385
        %v2387 = vpop.f32.mrb[0].mxu0
        %v2388 = vadd.f32 %v2309, %v2387
        %v2389 = vpop.f32.mrb[0].mxu0
        %2390 = vdwg.mxu0
        %s2391 = sld [smem:[#allocation2]]
        %v2392 = vlaneseq
        %v2393 = vand.u32 %v2392, 127
        %vm2394 = vcmp.lt.s32.totalorder %v2393, 4
        %v2395 = vstv %s2391
        %v2396 = vmul.f32 %v2388, %v2395
        %v2397 = vsel %vm2394, %v2396, -1e+30
        %2398 = vmax.xlane.f32.xlu0 %v2397
        %v2399 = vpop.xlane.xlu0 %2398
        %v2400 = vsub.f32 %v2397, %v2399
        %v2401 = vmul.f32 %v2400, 1.442695
        %v2402 = vpow.pop %v2401
        %2403 = vadd.xlane.f32.xlu0 %v2402
        %v2404 = vpop.xlane.xlu0 %2403
        %v2405 = vrcp.pop %v2404
        %v2406 = vmul.f32 %v2402, %v2405
        %vm2407 = vcmp.eq.s32.totalorder %v2393, 4
        %v2408 = vsel %vm2407, %v2388, 0.0
        %v2409 = vadd.f32 %v2406, %v2408
        %2410 = vst [vmem:[%s352] sm:$0xff] %v2409
        %s2411 = sand.u32 %s187, 1
        %s2412 = scalar_lea.sflag [#allocation5], %s2411
        %s2413 = sand.u32 %s187, 1
        %s2414 = smul.addr %s2413, 8
        %s2415 = scalar_lea.vmem [#allocation12], %s2414
        // Predicated region
        $region69: #{tpu_custom_call.1} parent=47 // pred_check
          %p2416 = pneg %p197
        $region70: #{tpu_custom_call.1} parent=47 // pred_check_branch
          %2418 = sbr.rel (%p2416) target = $region72
        $region71: #{tpu_custom_call.1} parent=47 // pred_region
          %s2420 = ssub.s32 128, 128
          %2421 = vsyncadd %s2412, %s2420
          %s2422 = smul.addr %s27, 128
          %s2423 = scalar_lea.hbm %s7, %s2422
          %s2425 = sshll.u32 %s2415, 4
          %s2426 = int_to_ptr.vmem [resolvable:$true] %s2425
          %2428 = dma.vmem_to_hbm [thread:$0]  %s2426, 128, %s2423, %s2412
        $region72: #{tpu_custom_call.1} parent=47 // pred_fallthru
          _
      $region48: #{tpu_custom_call.1} parent=5 // pred_fallthru
        _
      %p2429 = scmp.le.s32.totalorder 2, %s22
      // Predicated region
      $region73: #{tpu_custom_call.1} parent=5 // pred_check
        %p2430 = pneg %p2429
      $region74: #{tpu_custom_call.1} parent=5 // pred_check_branch
        %2432 = sbr.rel (%p2430) target = $region76
      $region75: #{tpu_custom_call.1} parent=5 // pred_region
        %s2433 = ssub.s32 %s22, 2
        // Predicated region
        $region77: #{tpu_custom_call.1} parent=75 // pred_check
          %p2434 = pneg %p203
        $region78: #{tpu_custom_call.1} parent=75 // pred_check_branch
          %2436 = sbr.rel (%p2434) target = $region80
        $region79: #{tpu_custom_call.1} parent=75 // pred_region
          %s2437 = sand.u32 %s188, 1
          %s2438 = scalar_lea.sflag [#allocation5], %s2437
          %s2439 = sand.u32 %s188, 1
          %s2440 = smul.addr %s2439, 8
          %s2441 = scalar_lea.vmem [#allocation12], %s2440
          %2442 = dma.done %s2438, 128
        $region80: #{tpu_custom_call.1} parent=75 // pred_fallthru
          _
      $region76: #{tpu_custom_call.1} parent=5 // pred_fallthru
        _
    $region6: #{tpu_custom_call.1} parent=1 // loop_footer
      %s26 = sadd.s32 1, %s22
    $region7: #{tpu_custom_call.1} parent=1 // loop_footer_branch
      %21 = sbr.rel target = $region3
    $region8: #{tpu_custom_call.1} parent=1 // loop_exit
      _
    %2443 = vsyncpa [#allocation4], 1
    %s2444 = scalar_lea.sflag [#allocation4], 1
    %2445 = vsyncpa %s2444, 1
    %2446 = vsyncpa [#allocation7], 1
    %2447 = vsyncpa [#allocation10], 1
    %2448 = vsyncpa [#allocation5], 1
    %s2449 = scalar_lea.sflag [#allocation5], 1
    %2450 = vsyncpa %s2449, 1

</llo_original>
